<compile_context>
chip_gen: v6e
topology: v6e:2x2x1
jax: 0.10.0
libtpu: 0.0.40
codegen_flags: <defaults>
</compile_context>

<pallas_src>
import jax
import jax.numpy as jnp
from jax.experimental import pallas as pl
from jax.experimental.pallas import tpu as pltpu


# ----------------------------------------------------------------------------
# Streaming kernel 1: Z = relu((A @ X) @ W1 + b1) @ W2   (aggregation width D)
# ----------------------------------------------------------------------------
def gcn1_kernel(a_ref, x_ref, w1_ref, b1_ref, w2_ref, z_ref, acc_ref):
    k = pl.program_id(1)
    tk = a_ref.shape[1]
    off = pl.multiple_of(k * tk, tk)

    # A[i, k] @ X[k]  (bf16 operands, f32 accumulation; X is VMEM-resident).
    part = jnp.dot(a_ref[...], x_ref[pl.ds(off, tk), :],
                   preferred_element_type=jnp.float32)

    @pl.when(k == 0)
    def _():
        acc_ref[...] = part           # init by assignment (no zero-fill + RMW)

    @pl.when(k > 0)
    def _():
        acc_ref[...] += part

    @pl.when(k == pl.num_programs(1) - 1)
    def _():
        h1 = jnp.dot(acc_ref[...].astype(jnp.bfloat16), w1_ref[...],
                     preferred_element_type=jnp.float32) + b1_ref[...]
        h1 = jnp.maximum(h1, 0.0)
        # Row-local pre-transform for layer 2: Z = H1 @ W2.
        z = jnp.dot(h1.astype(jnp.bfloat16), w2_ref[...],
                    preferred_element_type=jnp.float32)
        z_ref[...] = z.astype(z_ref.dtype)


# ----------------------------------------------------------------------------
# Streaming kernel 2: out = relu(relu(A @ Z + b2) @ W3 + b3) . w4 + b4
# ----------------------------------------------------------------------------
def gcn2_kernel(a_ref, z_ref, b2_ref, w3_ref, b3_ref, w4t_ref, b4_ref,
                out_ref, acc_ref):
    k = pl.program_id(1)
    tk = a_ref.shape[1]
    off = pl.multiple_of(k * tk, tk)

    # A[i, k] @ Z[k]  (Z is VMEM-resident).
    part = jnp.dot(a_ref[...], z_ref[pl.ds(off, tk), :],
                   preferred_element_type=jnp.float32)

    @pl.when(k == 0)
    def _():
        acc_ref[...] = part

    @pl.when(k > 0)
    def _():
        acc_ref[...] += part

    @pl.when(k == pl.num_programs(1) - 1)
    def _():
        h2 = jnp.maximum(acc_ref[...] + b2_ref[...], 0.0)
        h3 = jnp.dot(h2.astype(jnp.bfloat16), w3_ref[...],
                     preferred_element_type=jnp.float32) + b3_ref[...]
        h3 = jnp.maximum(h3, 0.0)
        # fc2 as VPU multiply + lane reduce (avoids a 1-lane MXU matmul).
        out_ref[...] = (jnp.sum(h3 * w4t_ref[...], axis=-1, keepdims=True)
                        + b4_ref[...])


# ----------------------------------------------------------------------------
# Fused small-N kernel: A_hat fully VMEM-resident, read from HBM once.
# Two-phase grid (both axes "arbitrary"): phase 0 builds Z into a persistent
# VMEM scratch per row tile; phase 1 does A @ Z + fc1 + fc2 per row tile.
# ----------------------------------------------------------------------------
def fused_kernel(a_ref, x_ref, w1_ref, b1_ref, w2_ref, b2_ref, w3_ref,
                 b3_ref, w4t_ref, b4_ref, out_ref, z_ref):
    phase = pl.program_id(0)
    i = pl.program_id(1)
    tm = out_ref.shape[0]
    row = pl.multiple_of(i * tm, tm)
    a_rows = a_ref[pl.ds(row, tm), :]            # (tm, np_) bf16

    @pl.when(phase == 0)
    def _():
        agg1 = jnp.dot(a_rows, x_ref[...], preferred_element_type=jnp.float32)
        h1 = jnp.maximum(
            jnp.dot(agg1.astype(jnp.bfloat16), w1_ref[...],
                    preferred_element_type=jnp.float32) + b1_ref[...], 0.0)
        z_ref[pl.ds(row, tm), :] = jnp.dot(
            h1.astype(jnp.bfloat16), w2_ref[...],
            preferred_element_type=jnp.float32).astype(z_ref.dtype)
        out_ref[...] = jnp.zeros_like(out_ref)   # keep writeback defined

    @pl.when(phase == 1)
    def _():
        agg2 = jnp.dot(a_rows, z_ref[...], preferred_element_type=jnp.float32)
        h2 = jnp.maximum(agg2 + b2_ref[...], 0.0)
        h3 = jnp.maximum(
            jnp.dot(h2.astype(jnp.bfloat16), w3_ref[...],
                    preferred_element_type=jnp.float32) + b3_ref[...], 0.0)
        out_ref[...] = (jnp.sum(h3 * w4t_ref[...], axis=-1, keepdims=True)
                        + b4_ref[...])


# ----------------------------------------------------------------------------
# Config / one-time prep (hoisted out of the per-forward path)
# ----------------------------------------------------------------------------
def select_config(n, *, tile_m=256, tile_k=512, fuse_max_nodes=2048):
    """Pick (8,128)-aligned tiles, padded size, and fused-path eligibility."""
    np0 = pl.cdiv(n, 128) * 128

    def clamp_pow2_128(t):
        t = max(128, min(t, np0))
        p = 128
        while p * 2 <= t:
            p *= 2
        return p

    tile_k = clamp_pow2_128(tile_k)
    tile_m = clamp_pow2_128(tile_m)
    step = max(tile_m, tile_k)
    np_ = pl.cdiv(n, step) * step
    # v7x has 2 TensorCores: keep >= 2 blocks on the "parallel" row axis.
    while tile_m > 128 and np_ // tile_m < 2:
        tile_m //= 2
    use_fused = np_ <= fuse_max_nodes          # A (bf16, double-buffered) fits VMEM
    return np_, tile_m, tile_k, bool(use_fused)


def prepare_inputs(a_norm, x, np_):
    """Pad + bf16-cast A_hat and X once per graph (hoisted from the forward).

    Padded A columns MUST stay exactly zero: padded rows of Z are nonzero
    (relu(b1) @ W2) and are only ignored because those A columns are zero.
    """
    n = a_norm.shape[0]
    d = x.shape[1]
    a_p = jnp.zeros((np_, np_), jnp.bfloat16).at[:n, :n].set(
        a_norm.astype(jnp.bfloat16))
    x_p = jnp.zeros((np_, d), jnp.bfloat16).at[:n, :].set(
        x.astype(jnp.bfloat16))
    return a_p, x_p


def prepare_params(params):
    """bf16-cast the MXU weight operands once; biases / fc2 stay f32."""
    w1, b1, w2, b2, w3, b3, w4, b4 = params
    return (w1.astype(jnp.bfloat16), b1,
            w2.astype(jnp.bfloat16), b2,
            w3.astype(jnp.bfloat16), b3,
            jnp.transpose(w4), b4)            # w4^T: (1, H) f32


def _vmem_limit(est_bytes):
    # Explicit limit (v5e scoped default is only 16 MiB); cap at 48 MiB so a
    # v6e-tuned config cannot blow v7x's 64 MiB physical VMEM.
    return int(min(48 * 2**20, max(16 * 2**20, 2 * est_bytes)))


# ----------------------------------------------------------------------------
# Forward
# ----------------------------------------------------------------------------
def net_full_forward(a_p, x_p, params_p, *, n_valid, tile_m, tile_k,
                     use_fused):
    """a_p: [np_, np_] bf16 padded normalized adjacency; x_p: [np_, D] bf16."""
    np_, d = x_p.shape
    w1, b1, w2, b2, w3, b3, w4t, b4 = params_p
    h = w1.shape[1]

    if use_fused:
        # --- single pass, A resident in VMEM (read from HBM once) -----------
        est = (2 * np_ * np_ * 2 + 2 * np_ * d * 2 + np_ * h * 2
               + 2 * tile_m * 4 + 4 * h * h)
        out_p = pl.pallas_call(
            fused_kernel,
            out_shape=jax.ShapeDtypeStruct((np_, 1), jnp.float32),
            grid_spec=pltpu.PrefetchScalarGridSpec(
                num_scalar_prefetch=0,
                grid=(2, np_ // tile_m),
                in_specs=[
                    pl.BlockSpec((np_, np_), lambda p, i: (0, 0)),  # A resident
                    pl.BlockSpec((np_, d),   lambda p, i: (0, 0)),  # X resident
                    pl.BlockSpec((d, h),     lambda p, i: (0, 0)),  # W1
                    pl.BlockSpec((1, h),     lambda p, i: (0, 0)),  # b1
                    pl.BlockSpec((h, h),     lambda p, i: (0, 0)),  # W2
                    pl.BlockSpec((1, h),     lambda p, i: (0, 0)),  # b2
                    pl.BlockSpec((h, h),     lambda p, i: (0, 0)),  # W3
                    pl.BlockSpec((1, h),     lambda p, i: (0, 0)),  # b3
                    pl.BlockSpec((1, h),     lambda p, i: (0, 0)),  # w4^T
                    pl.BlockSpec((1, 1),     lambda p, i: (0, 0)),  # b4
                ],
                out_specs=pl.BlockSpec((tile_m, 1), lambda p, i: (i, 0)),
                scratch_shapes=[pltpu.VMEM((np_, h), jnp.bfloat16)],  # Z
            ),
            # Phase 1 needs Z from ALL row tiles of phase 0 -> serial grid.
            compiler_params=pltpu.CompilerParams(
                dimension_semantics=("arbitrary", "arbitrary"),
                vmem_limit_bytes=_vmem_limit(est)),
            cost_estimate=pl.CostEstimate(
                flops=2 * np_ * np_ * (d + h) + 4 * np_ * h * h
                      + 2 * np_ * d * h + 2 * np_ * h,
                transcendentals=0,
                bytes_accessed=np_ * np_ * 2 + np_ * d * 2 + np_ * 4
                               + (2 * h * h + d * h + 4 * h + 1) * 4),
        )(a_p, x_p, w1, b1, w2, b2, w3, b3, w4t, b4)
        return out_p[:n_valid]

    # --- large-N streaming path: two pallas_calls ----------------------------
    grid = (np_ // tile_m, np_ // tile_k)
    dim_sem = ("parallel", "arbitrary")

    # Kernel 1: Z = relu((A @ X) @ W1 + b1) @ W2
    est1 = (2 * tile_m * tile_k * 2 + 2 * np_ * d * 2 + 2 * tile_m * h * 2
            + tile_m * d * 4 + 4 * h * h)
    z = pl.pallas_call(
        gcn1_kernel,
        out_shape=jax.ShapeDtypeStruct((np_, h), jnp.bfloat16),
        grid_spec=pltpu.PrefetchScalarGridSpec(
            num_scalar_prefetch=0,
            grid=grid,
            in_specs=[
                pl.BlockSpec((tile_m, tile_k), lambda i, k: (i, k)),  # A_hat
                pl.BlockSpec((np_, d),         lambda i, k: (0, 0)),  # X resident
                pl.BlockSpec((d, h),           lambda i, k: (0, 0)),  # W1
                pl.BlockSpec((1, h),           lambda i, k: (0, 0)),  # b1
                pl.BlockSpec((h, h),           lambda i, k: (0, 0)),  # W2
            ],
            out_specs=pl.BlockSpec((tile_m, h), lambda i, k: (i, 0)),
            scratch_shapes=[pltpu.VMEM((tile_m, d), jnp.float32)],
        ),
        compiler_params=pltpu.CompilerParams(
            dimension_semantics=dim_sem, vmem_limit_bytes=_vmem_limit(est1)),
        cost_estimate=pl.CostEstimate(
            flops=2 * np_ * np_ * d + 2 * np_ * d * h + 2 * np_ * h * h,
            transcendentals=0,
            bytes_accessed=np_ * np_ * 2 + np_ * d * 2 + np_ * h * 2
                           + (d * h + h + h * h) * 4),
    )(a_p, x_p, w1, b1, w2)

    # Kernel 2: out = relu(relu(A @ Z + b2) @ W3 + b3) . w4 + b4
    est2 = (2 * tile_m * tile_k * 2 + 2 * np_ * h * 2 + 2 * tile_m * 4
            + tile_m * h * 4 + 4 * h * h)
    out_p = pl.pallas_call(
        gcn2_kernel,
        out_shape=jax.ShapeDtypeStruct((np_, 1), jnp.float32),
        grid_spec=pltpu.PrefetchScalarGridSpec(
            num_scalar_prefetch=0,
            grid=grid,
            in_specs=[
                pl.BlockSpec((tile_m, tile_k), lambda i, k: (i, k)),  # A_hat
                pl.BlockSpec((np_, h),         lambda i, k: (0, 0)),  # Z resident
                pl.BlockSpec((1, h),           lambda i, k: (0, 0)),  # b2
                pl.BlockSpec((h, h),           lambda i, k: (0, 0)),  # W3
                pl.BlockSpec((1, h),           lambda i, k: (0, 0)),  # b3
                pl.BlockSpec((1, h),           lambda i, k: (0, 0)),  # w4^T
                pl.BlockSpec((1, 1),           lambda i, k: (0, 0)),  # b4
            ],
            out_specs=pl.BlockSpec((tile_m, 1), lambda i, k: (i, 0)),
            scratch_shapes=[pltpu.VMEM((tile_m, h), jnp.float32)],
        ),
        compiler_params=pltpu.CompilerParams(
            dimension_semantics=dim_sem, vmem_limit_bytes=_vmem_limit(est2)),
        cost_estimate=pl.CostEstimate(
            flops=2 * np_ * np_ * h + 2 * np_ * h * h + 2 * np_ * h,
            transcendentals=0,
            bytes_accessed=np_ * np_ * 2 + np_ * h * 2 + np_ * 4
                           + (2 * h * h + 4 * h + 1) * 4),
    )(a_p, z, b2, w3, b3, w4t, b4)

    return out_p[:n_valid]


# ----------------------------------------------------------------------------
# Graph / parameter construction (plain JAX glue)
# ----------------------------------------------------------------------------
def build_norm_adj(edge_index, num_nodes):
    """Dense D^{-1/2} (A + I) D^{-1/2}, matching GCNConv's default norm."""
    src = edge_index[0]
    dst = edge_index[1]
    a = jnp.zeros((num_nodes, num_nodes), jnp.float32).at[dst, src].set(1.0)
    a = a + jnp.eye(num_nodes, dtype=jnp.float32)        # add self loops
    deg = a.sum(axis=1)
    d_inv_sqrt = jnp.where(deg > 0, 1.0 / jnp.sqrt(deg), 0.0)
    return d_inv_sqrt[:, None] * a * d_inv_sqrt[None, :]


def glorot(key, shape):
    fan_in, fan_out = shape[0], shape[1]
    limit = jnp.sqrt(6.0 / (fan_in + fan_out))
    return jax.random.uniform(key, shape, jnp.float32, -limit, limit)


def init_params(key, dim, hidden=32):
    ks = jax.random.split(key, 8)
    w1 = glorot(ks[0], (dim, hidden))
    b1 = jnp.zeros((1, hidden), jnp.float32)
    w2 = glorot(ks[1], (hidden, hidden))
    b2 = jnp.zeros((1, hidden), jnp.float32)
    lim3 = 1.0 / jnp.sqrt(jnp.float32(hidden))
    w3 = jax.random.uniform(ks[2], (hidden, hidden), jnp.float32, -lim3, lim3)
    b3 = jax.random.uniform(ks[3], (1, hidden), jnp.float32, -lim3, lim3)
    w4 = jax.random.uniform(ks[4], (hidden, 1), jnp.float32, -lim3, lim3)
    b4 = jax.random.uniform(ks[5], (1, 1), jnp.float32, -lim3, lim3)
    return (w1, b1, w2, b2, w3, b3, w4, b4)


if __name__ == "__main__":
    key = jax.random.PRNGKey(0)
    k_x, k_p = jax.random.split(key)

    N = 200     # number of graph nodes (not a tile multiple -> exercises padding)
    DIM = 8     # input feature dimension ("dim + features" from the script)
    HIDDEN = 32

    # Small deterministic graph: bidirectional ring over N nodes.
    idx = jnp.arange(N)
    src = jnp.concatenate([idx, (idx + 1) % N])
    dst = jnp.concatenate([(idx + 1) % N, idx])
    edge_index = jnp.stack([src, dst], axis=0)            # [2, E]

    x = jax.random.normal(k_x, (N, DIM), jnp.float32)     # data.x
    a_norm = build_norm_adj(edge_index, N)
    params = init_params(k_p, DIM, hidden=HIDDEN)

    # One-time prep (hoisted out of the forward): tiles, padded bf16 A/X, bf16 weights.
    np_, tile_m, tile_k, use_fused = select_config(N)
    a_p, x_p = prepare_inputs(a_norm, x, np_)
    params_p = prepare_params(params)

    fwd = jax.jit(net_full_forward,
                  static_argnames=("n_valid", "tile_m", "tile_k", "use_fused"))

    # Fused small-N fast path (default for this size) + forced streaming path,
    # so both code paths are compiled, run, and checked.
    out_fused = fwd(a_p, x_p, params_p, n_valid=N, tile_m=tile_m,
                    tile_k=tile_k, use_fused=use_fused)
    out_stream = fwd(a_p, x_p, params_p, n_valid=N, tile_m=tile_m,
                     tile_k=tile_k, use_fused=False)
    jax.block_until_ready((out_fused, out_stream))

    # Pure-JAX f32 reference of the same math (original association).
    w1, b1, w2, b2, w3, b3, w4, b4 = params
    hh = jnp.maximum(a_norm @ (x @ w1) + b1, 0.0)
    hh = jnp.maximum(a_norm @ (hh @ w2) + b2, 0.0)
    hh = jnp.maximum(hh @ w3 + b3, 0.0)
    ref = hh @ w4 + b4

    assert out_fused.shape == (N, 1) and out_stream.shape == (N, 1)
    # bf16 adjacency/activations in the aggregation path -> loosened tolerance.
    assert jnp.allclose(out_fused, ref, atol=5e-2, rtol=5e-2), (
        float(jnp.max(jnp.abs(out_fused - ref))))
    assert jnp.allclose(out_stream, ref, atol=5e-2, rtol=5e-2), (
        float(jnp.max(jnp.abs(out_stream - ref))))

    print("KERNEL_OK")
</pallas_src>

<mosaic_0001>
module attributes {stable_mosaic.version = 11 : i64} {
  func.func @fused_kernel(%arg0: i32, %arg1: i32, %arg2: memref<256x256xbf16, #tpu.memory_space<vmem>>, %arg3: memref<256x8xbf16, #tpu.memory_space<vmem>>, %arg4: memref<8x32xbf16, #tpu.memory_space<vmem>>, %arg5: memref<1x32xf32, #tpu.memory_space<vmem>>, %arg6: memref<32x32xbf16, #tpu.memory_space<vmem>>, %arg7: memref<1x32xf32, #tpu.memory_space<vmem>>, %arg8: memref<32x32xbf16, #tpu.memory_space<vmem>>, %arg9: memref<1x32xf32, #tpu.memory_space<vmem>>, %arg10: memref<1x32xf32, #tpu.memory_space<vmem>>, %arg11: memref<1x1xf32, #tpu.memory_space<vmem>>, %arg12: memref<128x1xf32, #tpu.memory_space<vmem>>, %arg13: memref<256x32xbf16, #tpu.memory_space<vmem>>) attributes {dimension_semantics = [#tpu.dimension_semantics<arbitrary>, #tpu.dimension_semantics<arbitrary>], iteration_bounds = array<i64: 2, 2>, scalar_prefetch = 0 : i64, scratch_operands = 1 : i64, tpu.core_type = #tpu.core_type<tc>, window_params = [{pipeline_mode = #tpu.pipeline_mode<synchronous>, transform_indices = @transform_0, window_bounds = array<i64: 256, 256>}, {pipeline_mode = #tpu.pipeline_mode<synchronous>, transform_indices = @transform_1, window_bounds = array<i64: 256, 8>}, {pipeline_mode = #tpu.pipeline_mode<synchronous>, transform_indices = @transform_2, window_bounds = array<i64: 8, 32>}, {pipeline_mode = #tpu.pipeline_mode<synchronous>, transform_indices = @transform_3, window_bounds = array<i64: 1, 32>}, {pipeline_mode = #tpu.pipeline_mode<synchronous>, transform_indices = @transform_4, window_bounds = array<i64: 32, 32>}, {pipeline_mode = #tpu.pipeline_mode<synchronous>, transform_indices = @transform_5, window_bounds = array<i64: 1, 32>}, {pipeline_mode = #tpu.pipeline_mode<synchronous>, transform_indices = @transform_6, window_bounds = array<i64: 32, 32>}, {pipeline_mode = #tpu.pipeline_mode<synchronous>, transform_indices = @transform_7, window_bounds = array<i64: 1, 32>}, {pipeline_mode = #tpu.pipeline_mode<synchronous>, transform_indices = @transform_8, window_bounds = array<i64: 1, 32>}, {pipeline_mode = #tpu.pipeline_mode<synchronous>, transform_indices = @transform_9, window_bounds = array<i64: 1, 1>}, {transform_indices = @transform_10, window_bounds = array<i64: 128, 1>}]} {
    %c128_i32 = arith.constant 128 : i32
    %0 = arith.muli %arg1, %c128_i32 : i32
    %1 = tpu.assume_multiple %0, 128 : i32
    %2 = arith.index_cast %1 : i32 to index
    %c0 = arith.constant 0 : index
    %3 = vector.load %arg2[%2, %c0] : memref<256x256xbf16, #tpu.memory_space<vmem>>, vector<128x256xbf16>
    %c0_i32 = arith.constant 0 : i32
    %4 = arith.cmpi eq, %arg0, %c0_i32 : i32
    %5 = arith.extui %4 : i1 to i32
    %c0_i32_0 = arith.constant 0 : i32
    %6 = arith.cmpi ne, %5, %c0_i32_0 : i32
    scf.if %6 {
      %c0_2 = arith.constant 0 : index
      %c0_3 = arith.constant 0 : index
      %10 = vector.load %arg3[%c0_2, %c0_3] : memref<256x8xbf16, #tpu.memory_space<vmem>>, vector<256x8xbf16>
      %cst = arith.constant dense<0.000000e+00> : vector<128x8xf32>
      %11 = tpu.matmul %3, %10, %cst {dimension_numbers = #tpu.dot_dimension_numbers<[1], [0], [0], [1], [0, 0, 1, 1], [], []>} : vector<128x256xbf16>, vector<256x8xbf16>, vector<128x8xf32> -> vector<128x8xf32>
      %12 = arith.truncf %11 : vector<128x8xf32> to vector<128x8xbf16>
      %c0_4 = arith.constant 0 : index
      %c0_5 = arith.constant 0 : index
      %13 = vector.load %arg4[%c0_4, %c0_5] : memref<8x32xbf16, #tpu.memory_space<vmem>>, vector<8x32xbf16>
      %cst_6 = arith.constant dense<0.000000e+00> : vector<128x32xf32>
      %14 = tpu.matmul %12, %13, %cst_6 {dimension_numbers = #tpu.dot_dimension_numbers<[1], [0], [0], [1], [0, 0, 1, 1], [], []>} : vector<128x8xbf16>, vector<8x32xbf16>, vector<128x32xf32> -> vector<128x32xf32>
      %c0_7 = arith.constant 0 : index
      %c0_8 = arith.constant 0 : index
      %15 = vector.load %arg5[%c0_7, %c0_8] : memref<1x32xf32, #tpu.memory_space<vmem>>, vector<1x32xf32>
      %16 = vector.broadcast %15 : vector<1x32xf32> to vector<128x32xf32>
      %17 = arith.addf %14, %16 : vector<128x32xf32>
      %cst_9 = arith.constant 0.000000e+00 : f32
      %18 = vector.broadcast %cst_9 : f32 to vector<128x32xf32>
      %19 = arith.maximumf %17, %18 : vector<128x32xf32>
      %20 = arith.truncf %19 : vector<128x32xf32> to vector<128x32xbf16>
      %c0_10 = arith.constant 0 : index
      %c0_11 = arith.constant 0 : index
      %21 = vector.load %arg6[%c0_10, %c0_11] : memref<32x32xbf16, #tpu.memory_space<vmem>>, vector<32x32xbf16>
      %cst_12 = arith.constant dense<0.000000e+00> : vector<128x32xf32>
      %22 = tpu.matmul %20, %21, %cst_12 {dimension_numbers = #tpu.dot_dimension_numbers<[1], [0], [0], [1], [0, 0, 1, 1], [], []>} : vector<128x32xbf16>, vector<32x32xbf16>, vector<128x32xf32> -> vector<128x32xf32>
      %23 = arith.truncf %22 : vector<128x32xf32> to vector<128x32xbf16>
      %24 = arith.index_cast %1 : i32 to index
      %c0_13 = arith.constant 0 : index
      %25 = vector.load %arg13[%24, %c0_13] : memref<256x32xbf16, #tpu.memory_space<vmem>>, vector<128x32xbf16>
      tpu.vector_store %arg13[%24, %c0_13], %23 {strides = array<i32>} : memref<256x32xbf16, #tpu.memory_space<vmem>>, vector<128x32xbf16>,
      %cst_14 = arith.constant 0.000000e+00 : f32
      %26 = vector.broadcast %cst_14 : f32 to vector<128x1xf32>
      %c0_15 = arith.constant 0 : index
      %c0_16 = arith.constant 0 : index
      %27 = vector.load %arg12[%c0_15, %c0_16] : memref<128x1xf32, #tpu.memory_space<vmem>>, vector<128x1xf32>
      tpu.vector_store %arg12[%c0_15, %c0_16], %26 {strides = array<i32>} : memref<128x1xf32, #tpu.memory_space<vmem>>, vector<128x1xf32>,
    } else {
    }
    %c1_i32 = arith.constant 1 : i32
    %7 = arith.cmpi eq, %arg0, %c1_i32 : i32
    %8 = arith.extui %7 : i1 to i32
    %c0_i32_1 = arith.constant 0 : i32
    %9 = arith.cmpi ne, %8, %c0_i32_1 : i32
    scf.if %9 {
      %c0_2 = arith.constant 0 : index
      %c0_3 = arith.constant 0 : index
      %10 = vector.load %arg13[%c0_2, %c0_3] : memref<256x32xbf16, #tpu.memory_space<vmem>>, vector<256x32xbf16>
      %cst = arith.constant dense<0.000000e+00> : vector<128x32xf32>
      %11 = tpu.matmul %3, %10, %cst {dimension_numbers = #tpu.dot_dimension_numbers<[1], [0], [0], [1], [0, 0, 1, 1], [], []>} : vector<128x256xbf16>, vector<256x32xbf16>, vector<128x32xf32> -> vector<128x32xf32>
      %c0_4 = arith.constant 0 : index
      %c0_5 = arith.constant 0 : index
      %12 = vector.load %arg7[%c0_4, %c0_5] : memref<1x32xf32, #tpu.memory_space<vmem>>, vector<1x32xf32>
      %13 = vector.broadcast %12 : vector<1x32xf32> to vector<128x32xf32>
      %14 = arith.addf %11, %13 : vector<128x32xf32>
      %cst_6 = arith.constant 0.000000e+00 : f32
      %15 = vector.broadcast %cst_6 : f32 to vector<128x32xf32>
      %16 = arith.maximumf %14, %15 : vector<128x32xf32>
      %17 = arith.truncf %16 : vector<128x32xf32> to vector<128x32xbf16>
      %c0_7 = arith.constant 0 : index
      %c0_8 = arith.constant 0 : index
      %18 = vector.load %arg8[%c0_7, %c0_8] : memref<32x32xbf16, #tpu.memory_space<vmem>>, vector<32x32xbf16>
      %cst_9 = arith.constant dense<0.000000e+00> : vector<128x32xf32>
      %19 = tpu.matmul %17, %18, %cst_9 {dimension_numbers = #tpu.dot_dimension_numbers<[1], [0], [0], [1], [0, 0, 1, 1], [], []>} : vector<128x32xbf16>, vector<32x32xbf16>, vector<128x32xf32> -> vector<128x32xf32>
      %c0_10 = arith.constant 0 : index
      %c0_11 = arith.constant 0 : index
      %20 = vector.load %arg9[%c0_10, %c0_11] : memref<1x32xf32, #tpu.memory_space<vmem>>, vector<1x32xf32>
      %21 = vector.broadcast %20 : vector<1x32xf32> to vector<128x32xf32>
      %22 = arith.addf %19, %21 : vector<128x32xf32>
      %cst_12 = arith.constant 0.000000e+00 : f32
      %23 = vector.broadcast %cst_12 : f32 to vector<128x32xf32>
      %24 = arith.maximumf %22, %23 : vector<128x32xf32>
      %c0_13 = arith.constant 0 : index
      %c0_14 = arith.constant 0 : index
      %25 = vector.load %arg10[%c0_13, %c0_14] : memref<1x32xf32, #tpu.memory_space<vmem>>, vector<1x32xf32>
      %26 = vector.broadcast %25 : vector<1x32xf32> to vector<128x32xf32>
      %27 = arith.mulf %24, %26 : vector<128x32xf32>
      %cst_15 = arith.constant dense<0.000000e+00> : vector<128xf32>
      %28 = vector.multi_reduction <add>, %27, %cst_15 [1] : vector<128x32xf32> to vector<128xf32>
      %29 = vector.shape_cast %28 : vector<128xf32> to vector<128x1xf32>
      %c0_16 = arith.constant 0 : index
      %c0_17 = arith.constant 0 : index
      %30 = vector.load %arg11[%c0_16, %c0_17] : memref<1x1xf32, #tpu.memory_space<vmem>>, vector<1x1xf32>
      %31 = vector.broadcast %30 : vector<1x1xf32> to vector<128x1xf32>
      %32 = arith.addf %29, %31 : vector<128x1xf32>
      %c0_18 = arith.constant 0 : index
      %c0_19 = arith.constant 0 : index
      %33 = vector.load %arg12[%c0_18, %c0_19] : memref<128x1xf32, #tpu.memory_space<vmem>>, vector<128x1xf32>
      tpu.vector_store %arg12[%c0_18, %c0_19], %32 {strides = array<i32>} : memref<128x1xf32, #tpu.memory_space<vmem>>, vector<128x1xf32>,
    } else {
    }
    return
  }
  func.func @transform_0(%arg0: i32, %arg1: i32) -> (i32, i32) {
    %c0_i32 = arith.constant 0 : i32
    %c0_i32_0 = arith.constant 0 : i32
    %c0_i32_1 = arith.constant 0 : i32
    return %c0_i32, %c0_i32_0 : i32, i32
  }
  func.func @transform_1(%arg0: i32, %arg1: i32) -> (i32, i32) {
    %c0_i32 = arith.constant 0 : i32
    %c0_i32_0 = arith.constant 0 : i32
    %c0_i32_1 = arith.constant 0 : i32
    return %c0_i32, %c0_i32_0 : i32, i32
  }
  func.func @transform_2(%arg0: i32, %arg1: i32) -> (i32, i32) {
    %c0_i32 = arith.constant 0 : i32
    %c0_i32_0 = arith.constant 0 : i32
    %c0_i32_1 = arith.constant 0 : i32
    return %c0_i32, %c0_i32_0 : i32, i32
  }
  func.func @transform_3(%arg0: i32, %arg1: i32) -> (i32, i32) {
    %c0_i32 = arith.constant 0 : i32
    %c0_i32_0 = arith.constant 0 : i32
    %c0_i32_1 = arith.constant 0 : i32
    return %c0_i32, %c0_i32_0 : i32, i32
  }
  func.func @transform_4(%arg0: i32, %arg1: i32) -> (i32, i32) {
    %c0_i32 = arith.constant 0 : i32
    %c0_i32_0 = arith.constant 0 : i32
    %c0_i32_1 = arith.constant 0 : i32
    return %c0_i32, %c0_i32_0 : i32, i32
  }
  func.func @transform_5(%arg0: i32, %arg1: i32) -> (i32, i32) {
    %c0_i32 = arith.constant 0 : i32
    %c0_i32_0 = arith.constant 0 : i32
    %c0_i32_1 = arith.constant 0 : i32
    return %c0_i32, %c0_i32_0 : i32, i32
  }
  func.func @transform_6(%arg0: i32, %arg1: i32) -> (i32, i32) {
    %c0_i32 = arith.constant 0 : i32
    %c0_i32_0 = arith.constant 0 : i32
    %c0_i32_1 = arith.constant 0 : i32
    return %c0_i32, %c0_i32_0 : i32, i32
  }
  func.func @transform_7(%arg0: i32, %arg1: i32) -> (i32, i32) {
    %c0_i32 = arith.constant 0 : i32
    %c0_i32_0 = arith.constant 0 : i32
    %c0_i32_1 = arith.constant 0 : i32
    return %c0_i32, %c0_i32_0 : i32, i32
  }
  func.func @transform_8(%arg0: i32, %arg1: i32) -> (i32, i32) {
    %c0_i32 = arith.constant 0 : i32
    %c0_i32_0 = arith.constant 0 : i32
    %c0_i32_1 = arith.constant 0 : i32
    return %c0_i32, %c0_i32_0 : i32, i32
  }
  func.func @transform_9(%arg0: i32, %arg1: i32) -> (i32, i32) {
    %c0_i32 = arith.constant 0 : i32
    %c0_i32_0 = arith.constant 0 : i32
    %c0_i32_1 = arith.constant 0 : i32
    return %c0_i32, %c0_i32_0 : i32, i32
  }
  func.func @transform_10(%arg0: i32, %arg1: i32) -> (i32, i32) {
    %c0_i32 = arith.constant 0 : i32
    %c0_i32_0 = arith.constant 0 : i32
    return %arg1, %c0_i32 : i32, i32
  }
}

</mosaic_0001>

<llo_original>
// kernel: net_full_forward.1
$region0: #{net_full_forward.1}
  #allocation0 [shape = 'u32[]', space=smem, size = 0x4, offset = 0x4, fixed_abs, tag = 'smem constant byte address 0x4 - core index']
  #allocation1 [shape = 'u32[144,128]{1,0:T(1,128)}', space=vmem, size = 0x12000, scoped, tag = 'internal scratch']
  #allocation2 [shape = 'bf16[256,32]{1,0:T(8,128)(2,1)}', space=vmem, size = 0x10000, scoped, tag = 'scratch operand']
  #allocation3 [shape = 'f32[1,1]{1,0:T(1,128)S(1)}', space=vmem, size = 0x200, scoped, tag = 'scoped memory for net_full_forward.1']
  %s0 = inlined_call_operand.hbm [shape: bf16[256,256], index: 0, kind: input, shape index: {}]
  %s1 = inlined_call_operand.vmem [shape: bf16[256,8], index: 1, kind: input, shape index: {}]
  %s2 = inlined_call_operand.vmem [shape: bf16[8,32], index: 2, kind: input, shape index: {}]
  %s3 = inlined_call_operand.vmem [shape: f32[1,32], index: 3, kind: input, shape index: {}]
  %s4 = inlined_call_operand.vmem [shape: bf16[32,32], index: 4, kind: input, shape index: {}]
  %s5 = inlined_call_operand.vmem [shape: f32[1,32], index: 5, kind: input, shape index: {}]
  %s6 = inlined_call_operand.vmem [shape: bf16[32,32], index: 6, kind: input, shape index: {}]
  %s7 = inlined_call_operand.vmem [shape: f32[1,32], index: 7, kind: input, shape index: {}]
  %s8 = inlined_call_operand.vmem [shape: f32[1,32], index: 8, kind: input, shape index: {}]
  %s9 = inlined_call_operand.<no memory space> [shape: f32[1,1], index: 9, kind: input, shape index: {}]
  %s10 = inlined_call_operand.vmem [shape: f32[256,1], index: 10, kind: output, shape index: {}]
  %s11 = sld [smem:[#allocation0]]
  $region85: #{net_full_forward.1} parent=0
    _
  %s13 = ssub.s32 1, %s11
  %s14 = scalar_select 0, %s13, %s11
  %v15 = vstv %s9
  %16 = vst [vmem:[#allocation3] sm:$0x1] %v15
  $region1: #{net_full_forward.1} parent=0
    #allocation4 [shape = 'u8[131072]{0}', space=vmem, size = 0x20000, scoped, tag = 'input window, operand 0, single buffered']
    #allocation5 [shape = 's32[2]{0}', space=sflag, size = 0x8, scoped, tag = 'scoped memory for net_full_forward.1']
    %17 = vsyncpa [#allocation5], 0
    loop: start=0, step=1, limit=6
    $region2: #{net_full_forward.1} parent=1 // loop_pre_header
      _
    $region3: #{net_full_forward.1} parent=1 // loop_header
      %s19 = sphi 0, %s23
      %p20 = scmp.ge.s32.totalorder %s19, 6
      %s26 = sphi 0, %s38
      %s27 = sphi 0, %s34
      %s28 = sphi 0, %s26
      %s29 = sphi 0, %s27
      %s30 = sphi 0, %s28
      %s31 = sphi 0, %s29
      %s39 = sphi 0, %s39
      %s41 = sphi 0, %s39
      %s42 = sphi 0, %s41
      %s56 = sphi 0, %s42
      %s60 = sphi 0, %s60
      %s62 = sphi 0, %s60
      %s63 = sphi 0, %s62
      %s77 = sphi 0, %s63
      %s81 = sphi 0, %s81
      %s83 = sphi 0, %s81
      %s84 = sphi 0, %s83
      %s98 = sphi 0, %s84
      %s102 = sphi 0, %s102
      %s104 = sphi 0, %s102
      %s105 = sphi 0, %s104
      %s119 = sphi 0, %s105
      %s123 = sphi 0, %s123
      %s125 = sphi 0, %s123
      %s126 = sphi 0, %s125
      %s140 = sphi 0, %s126
      %s144 = sphi 0, %s144
      %s146 = sphi 0, %s144
      %s147 = sphi 0, %s146
      %s161 = sphi 0, %s147
      %s165 = sphi 0, %s165
      %s167 = sphi 0, %s165
      %s168 = sphi 0, %s167
      %s182 = sphi 0, %s168
      %s186 = sphi 0, %s186
      %s188 = sphi 0, %s186
      %s189 = sphi 0, %s188
      %s203 = sphi 0, %s189
      %s207 = sphi 0, %s207
      %s209 = sphi 0, %s207
      %s210 = sphi 0, %s209
      %s224 = sphi 0, %s210
      %s228 = sphi 0, %s228
      %s230 = sphi 0, %s228
      %s231 = sphi 0, %s230
      %s245 = sphi 0, %s231
      %s251 = sphi 0, %s253
      %s254 = sphi 0, %s251
      %s255 = sphi 0, %s254
      %s271 = sphi 0, %s255
    $region4: #{net_full_forward.1} parent=1 // loop_header_branch
      %22 = sbr.rel (%p20) target = $region8
    $region5: #{net_full_forward.1} parent=1 // loop_body
      %s24 = ssub.s32 %s19, 1
      %s25 = ssub.s32 %s19, 2
      %s32 = sadd.s32 1, %s27
      %p33 = scmp.ge.s32.totalorder %s32, 2
      %s34 = scalar_select %p33, 0, %s32
      %s35 = sadd.s32 1, %s26
      %s36 = scalar_select %p33, %s35, %s26
      %p37 = scmp.ge.s32.totalorder %s36, 2
      %s38 = scalar_select %p37, 0, %s36
      %s40 = sadd.s32 %s39, 1
      %p43 = scmp.eq.s32.totalorder %s19, 3
      %p44 = scmp.ne.s32.totalorder %s39, %s41
      %p45 = scmp.eq.s32.totalorder %s19, 0
      %p46 = por %p44, %p45
      %p47 = scmp.ne.s32.totalorder %s39, %s41
      %p48 = scmp.eq.s32.totalorder %s24, 3
      %p49 = por %p47, %p48
      %p50 = scmp.ne.s32.totalorder %s41, %s42
      %p51 = scmp.eq.s32.totalorder %s24, 0
      %p52 = por %p50, %p51
      %p53 = scmp.ne.s32.totalorder %s41, %s42
      %p54 = scmp.eq.s32.totalorder %s25, 3
      %p55 = por %p53, %p54
      %p57 = scmp.ne.s32.totalorder %s42, %s56
      %p58 = scmp.eq.s32.totalorder %s25, 0
      %p59 = por %p57, %p58
      %s61 = sadd.s32 %s60, 1
      %p64 = scmp.eq.s32.totalorder %s19, 3
      %p65 = scmp.ne.s32.totalorder %s60, %s62
      %p66 = scmp.eq.s32.totalorder %s19, 0
      %p67 = por %p65, %p66
      %p68 = scmp.ne.s32.totalorder %s60, %s62
      %p69 = scmp.eq.s32.totalorder %s24, 3
      %p70 = por %p68, %p69
      %p71 = scmp.ne.s32.totalorder %s62, %s63
      %p72 = scmp.eq.s32.totalorder %s24, 0
      %p73 = por %p71, %p72
      %p74 = scmp.ne.s32.totalorder %s62, %s63
      %p75 = scmp.eq.s32.totalorder %s25, 3
      %p76 = por %p74, %p75
      %p78 = scmp.ne.s32.totalorder %s63, %s77
      %p79 = scmp.eq.s32.totalorder %s25, 0
      %p80 = por %p78, %p79
      %s82 = sadd.s32 %s81, 1
      %p85 = scmp.eq.s32.totalorder %s19, 3
      %p86 = scmp.ne.s32.totalorder %s81, %s83
      %p87 = scmp.eq.s32.totalorder %s19, 0
      %p88 = por %p86, %p87
      %p89 = scmp.ne.s32.totalorder %s81, %s83
      %p90 = scmp.eq.s32.totalorder %s24, 3
      %p91 = por %p89, %p90
      %p92 = scmp.ne.s32.totalorder %s83, %s84
      %p93 = scmp.eq.s32.totalorder %s24, 0
      %p94 = por %p92, %p93
      %p95 = scmp.ne.s32.totalorder %s83, %s84
      %p96 = scmp.eq.s32.totalorder %s25, 3
      %p97 = por %p95, %p96
      %p99 = scmp.ne.s32.totalorder %s84, %s98
      %p100 = scmp.eq.s32.totalorder %s25, 0
      %p101 = por %p99, %p100
      %s103 = sadd.s32 %s102, 1
      %p106 = scmp.eq.s32.totalorder %s19, 3
      %p107 = scmp.ne.s32.totalorder %s102, %s104
      %p108 = scmp.eq.s32.totalorder %s19, 0
      %p109 = por %p107, %p108
      %p110 = scmp.ne.s32.totalorder %s102, %s104
      %p111 = scmp.eq.s32.totalorder %s24, 3
      %p112 = por %p110, %p111
      %p113 = scmp.ne.s32.totalorder %s104, %s105
      %p114 = scmp.eq.s32.totalorder %s24, 0
      %p115 = por %p113, %p114
      %p116 = scmp.ne.s32.totalorder %s104, %s105
      %p117 = scmp.eq.s32.totalorder %s25, 3
      %p118 = por %p116, %p117
      %p120 = scmp.ne.s32.totalorder %s105, %s119
      %p121 = scmp.eq.s32.totalorder %s25, 0
      %p122 = por %p120, %p121
      %s124 = sadd.s32 %s123, 1
      %p127 = scmp.eq.s32.totalorder %s19, 3
      %p128 = scmp.ne.s32.totalorder %s123, %s125
      %p129 = scmp.eq.s32.totalorder %s19, 0
      %p130 = por %p128, %p129
      %p131 = scmp.ne.s32.totalorder %s123, %s125
      %p132 = scmp.eq.s32.totalorder %s24, 3
      %p133 = por %p131, %p132
      %p134 = scmp.ne.s32.totalorder %s125, %s126
      %p135 = scmp.eq.s32.totalorder %s24, 0
      %p136 = por %p134, %p135
      %p137 = scmp.ne.s32.totalorder %s125, %s126
      %p138 = scmp.eq.s32.totalorder %s25, 3
      %p139 = por %p137, %p138
      %p141 = scmp.ne.s32.totalorder %s126, %s140
      %p142 = scmp.eq.s32.totalorder %s25, 0
      %p143 = por %p141, %p142
      %s145 = sadd.s32 %s144, 1
      %p148 = scmp.eq.s32.totalorder %s19, 3
      %p149 = scmp.ne.s32.totalorder %s144, %s146
      %p150 = scmp.eq.s32.totalorder %s19, 0
      %p151 = por %p149, %p150
      %p152 = scmp.ne.s32.totalorder %s144, %s146
      %p153 = scmp.eq.s32.totalorder %s24, 3
      %p154 = por %p152, %p153
      %p155 = scmp.ne.s32.totalorder %s146, %s147
      %p156 = scmp.eq.s32.totalorder %s24, 0
      %p157 = por %p155, %p156
      %p158 = scmp.ne.s32.totalorder %s146, %s147
      %p159 = scmp.eq.s32.totalorder %s25, 3
      %p160 = por %p158, %p159
      %p162 = scmp.ne.s32.totalorder %s147, %s161
      %p163 = scmp.eq.s32.totalorder %s25, 0
      %p164 = por %p162, %p163
      %s166 = sadd.s32 %s165, 1
      %p169 = scmp.eq.s32.totalorder %s19, 3
      %p170 = scmp.ne.s32.totalorder %s165, %s167
      %p171 = scmp.eq.s32.totalorder %s19, 0
      %p172 = por %p170, %p171
      %p173 = scmp.ne.s32.totalorder %s165, %s167
      %p174 = scmp.eq.s32.totalorder %s24, 3
      %p175 = por %p173, %p174
      %p176 = scmp.ne.s32.totalorder %s167, %s168
      %p177 = scmp.eq.s32.totalorder %s24, 0
      %p178 = por %p176, %p177
      %p179 = scmp.ne.s32.totalorder %s167, %s168
      %p180 = scmp.eq.s32.totalorder %s25, 3
      %p181 = por %p179, %p180
      %p183 = scmp.ne.s32.totalorder %s168, %s182
      %p184 = scmp.eq.s32.totalorder %s25, 0
      %p185 = por %p183, %p184
      %s187 = sadd.s32 %s186, 1
      %p190 = scmp.eq.s32.totalorder %s19, 3
      %p191 = scmp.ne.s32.totalorder %s186, %s188
      %p192 = scmp.eq.s32.totalorder %s19, 0
      %p193 = por %p191, %p192
      %p194 = scmp.ne.s32.totalorder %s186, %s188
      %p195 = scmp.eq.s32.totalorder %s24, 3
      %p196 = por %p194, %p195
      %p197 = scmp.ne.s32.totalorder %s188, %s189
      %p198 = scmp.eq.s32.totalorder %s24, 0
      %p199 = por %p197, %p198
      %p200 = scmp.ne.s32.totalorder %s188, %s189
      %p201 = scmp.eq.s32.totalorder %s25, 3
      %p202 = por %p200, %p201
      %p204 = scmp.ne.s32.totalorder %s189, %s203
      %p205 = scmp.eq.s32.totalorder %s25, 0
      %p206 = por %p204, %p205
      %s208 = sadd.s32 %s207, 1
      %p211 = scmp.eq.s32.totalorder %s19, 3
      %p212 = scmp.ne.s32.totalorder %s207, %s209
      %p213 = scmp.eq.s32.totalorder %s19, 0
      %p214 = por %p212, %p213
      %p215 = scmp.ne.s32.totalorder %s207, %s209
      %p216 = scmp.eq.s32.totalorder %s24, 3
      %p217 = por %p215, %p216
      %p218 = scmp.ne.s32.totalorder %s209, %s210
      %p219 = scmp.eq.s32.totalorder %s24, 0
      %p220 = por %p218, %p219
      %p221 = scmp.ne.s32.totalorder %s209, %s210
      %p222 = scmp.eq.s32.totalorder %s25, 3
      %p223 = por %p221, %p222
      %p225 = scmp.ne.s32.totalorder %s210, %s224
      %p226 = scmp.eq.s32.totalorder %s25, 0
      %p227 = por %p225, %p226
      %s229 = sadd.s32 %s228, 1
      %p232 = scmp.eq.s32.totalorder %s19, 3
      %p233 = scmp.ne.s32.totalorder %s228, %s230
      %p234 = scmp.eq.s32.totalorder %s19, 0
      %p235 = por %p233, %p234
      %p236 = scmp.ne.s32.totalorder %s228, %s230
      %p237 = scmp.eq.s32.totalorder %s24, 3
      %p238 = por %p236, %p237
      %p239 = scmp.ne.s32.totalorder %s230, %s231
      %p240 = scmp.eq.s32.totalorder %s24, 0
      %p241 = por %p239, %p240
      %p242 = scmp.ne.s32.totalorder %s230, %s231
      %p243 = scmp.eq.s32.totalorder %s25, 3
      %p244 = por %p242, %p243
      %p246 = scmp.ne.s32.totalorder %s231, %s245
      %p247 = scmp.eq.s32.totalorder %s25, 0
      %p248 = por %p246, %p247
      %s249 = ssub.s32 %s27, %s34
      %p250 = scmp.eq.s32.totalorder %s249, 0
      %s252 = sadd.s32 %s251, 1
      %s253 = scalar_select %p250, %s251, %s252
      %p256 = pneg %p250
      %p257 = scmp.eq.s32.totalorder %s19, 3
      %p258 = por %p256, %p257
      %p259 = scmp.ne.s32.totalorder %s251, %s254
      %p260 = scmp.eq.s32.totalorder %s19, 0
      %p261 = por %p259, %p260
      %p262 = scmp.ne.s32.totalorder %s251, %s254
      %p263 = scmp.eq.s32.totalorder %s24, 3
      %p264 = por %p262, %p263
      %p265 = scmp.ne.s32.totalorder %s254, %s255
      %p266 = scmp.eq.s32.totalorder %s24, 0
      %p267 = por %p265, %p266
      %p268 = scmp.ne.s32.totalorder %s254, %s255
      %p269 = scmp.eq.s32.totalorder %s25, 3
      %p270 = por %p268, %p269
      %p272 = scmp.ne.s32.totalorder %s255, %s271
      %p273 = scmp.eq.s32.totalorder %s25, 0
      %p274 = por %p272, %p273
      %p275 = scmp.le.s32.totalorder 1, %s19
      %p276 = scmp.lt.s32.totalorder %s19, 5
      %p277 = pnand %p275, %p276
      %p278 = pneg %p277
      // Predicated region
      $region9: #{net_full_forward.1} parent=5 // pred_check
        _
      $region10: #{net_full_forward.1} parent=5 // pred_check_branch
        %280 = sbr.rel (%p277) target = $region12
      $region11: #{net_full_forward.1} parent=5 // pred_region
        %s281 = ssub.s32 %s19, 1
        // Predicated region
        $region13: #{net_full_forward.1} parent=11 // pred_check
          %p282 = pneg %p52
        $region14: #{net_full_forward.1} parent=11 // pred_check_branch
          %284 = sbr.rel (%p282) target = $region16
        $region15: #{net_full_forward.1} parent=11 // pred_region
          %s286 = ssub.s32 4096, 4096
          %287 = vsyncadd [#allocation5], %s286
          %s288 = sshll.u32 [#allocation4], 4
          %s289 = int_to_ptr.vmem [resolvable:$true] %s288
          %294 = dma.hbm_to_vmem [thread:$0]  %s0, 4096, %s289, [#allocation5], 128, 128, 8
        $region16: #{net_full_forward.1} parent=11 // pred_fallthru
          _
        // Predicated region
        $region17: #{net_full_forward.1} parent=11 // pred_check
          %p295 = pneg %p73
        $region18: #{net_full_forward.1} parent=11 // pred_check_branch
          %297 = sbr.rel (%p295) target = $region20
        $region19: #{net_full_forward.1} parent=11 // pred_region
          _
        $region20: #{net_full_forward.1} parent=11 // pred_fallthru
          _
        // Predicated region
        $region21: #{net_full_forward.1} parent=11 // pred_check
          %p298 = pneg %p94
        $region22: #{net_full_forward.1} parent=11 // pred_check_branch
          %300 = sbr.rel (%p298) target = $region24
        $region23: #{net_full_forward.1} parent=11 // pred_region
          _
        $region24: #{net_full_forward.1} parent=11 // pred_fallthru
          _
        // Predicated region
        $region25: #{net_full_forward.1} parent=11 // pred_check
          %p301 = pneg %p115
        $region26: #{net_full_forward.1} parent=11 // pred_check_branch
          %303 = sbr.rel (%p301) target = $region28
        $region27: #{net_full_forward.1} parent=11 // pred_region
          _
        $region28: #{net_full_forward.1} parent=11 // pred_fallthru
          _
        // Predicated region
        $region29: #{net_full_forward.1} parent=11 // pred_check
          %p304 = pneg %p136
        $region30: #{net_full_forward.1} parent=11 // pred_check_branch
          %306 = sbr.rel (%p304) target = $region32
        $region31: #{net_full_forward.1} parent=11 // pred_region
          _
        $region32: #{net_full_forward.1} parent=11 // pred_fallthru
          _
        // Predicated region
        $region33: #{net_full_forward.1} parent=11 // pred_check
          %p307 = pneg %p157
        $region34: #{net_full_forward.1} parent=11 // pred_check_branch
          %309 = sbr.rel (%p307) target = $region36
        $region35: #{net_full_forward.1} parent=11 // pred_region
          _
        $region36: #{net_full_forward.1} parent=11 // pred_fallthru
          _
        // Predicated region
        $region37: #{net_full_forward.1} parent=11 // pred_check
          %p310 = pneg %p178
        $region38: #{net_full_forward.1} parent=11 // pred_check_branch
          %312 = sbr.rel (%p310) target = $region40
        $region39: #{net_full_forward.1} parent=11 // pred_region
          _
        $region40: #{net_full_forward.1} parent=11 // pred_fallthru
          _
        // Predicated region
        $region41: #{net_full_forward.1} parent=11 // pred_check
          %p313 = pneg %p199
        $region42: #{net_full_forward.1} parent=11 // pred_check_branch
          %315 = sbr.rel (%p313) target = $region44
        $region43: #{net_full_forward.1} parent=11 // pred_region
          _
        $region44: #{net_full_forward.1} parent=11 // pred_fallthru
          _
        // Predicated region
        $region45: #{net_full_forward.1} parent=11 // pred_check
          %p316 = pneg %p220
        $region46: #{net_full_forward.1} parent=11 // pred_check_branch
          %318 = sbr.rel (%p316) target = $region48
        $region47: #{net_full_forward.1} parent=11 // pred_region
          _
        $region48: #{net_full_forward.1} parent=11 // pred_fallthru
          _
        // Predicated region
        $region49: #{net_full_forward.1} parent=11 // pred_check
          %p319 = pneg %p241
        $region50: #{net_full_forward.1} parent=11 // pred_check_branch
          %321 = sbr.rel (%p319) target = $region52
        $region51: #{net_full_forward.1} parent=11 // pred_region
          _
        $region52: #{net_full_forward.1} parent=11 // pred_fallthru
          _
      $region12: #{net_full_forward.1} parent=5 // pred_fallthru
        _
      %p322 = scmp.lt.s32.totalorder %s19, 4
      // Predicated region
      $region53: #{net_full_forward.1} parent=5 // pred_check
        %p323 = pneg %p322
      $region54: #{net_full_forward.1} parent=5 // pred_check_branch
        %325 = sbr.rel (%p323) target = $region56
      $region55: #{net_full_forward.1} parent=5 // pred_region
        _
      $region56: #{net_full_forward.1} parent=5 // pred_fallthru
        _
      %p326 = scmp.le.s32.totalorder 1, %s19
      %p327 = scmp.lt.s32.totalorder %s19, 5
      %p328 = pnand %p326, %p327
      %p329 = pneg %p328
      // Predicated region
      $region57: #{net_full_forward.1} parent=5 // pred_check
        _
      $region58: #{net_full_forward.1} parent=5 // pred_check_branch
        %331 = sbr.rel (%p328) target = $region60
      $region59: #{net_full_forward.1} parent=5 // pred_region
        %s332 = ssub.s32 %s19, 1
        // Predicated region
        $region61: #{net_full_forward.1} parent=59 // pred_check
          %p333 = pneg %p52
        $region62: #{net_full_forward.1} parent=59 // pred_check_branch
          %335 = sbr.rel (%p333) target = $region64
        $region63: #{net_full_forward.1} parent=59 // pred_region
          %336 = dma.done [#allocation5], 4096
        $region64: #{net_full_forward.1} parent=59 // pred_fallthru
          _
        %p337 = pneg %p52
        %p338 = pneg %p49
        %p339 = pneg %p73
        %p340 = pneg %p70
        %p341 = pneg %p94
        %p342 = pneg %p91
        %p343 = pneg %p115
        %p344 = pneg %p112
        %p345 = pneg %p136
        %p346 = pneg %p133
        %p347 = pneg %p157
        %p348 = pneg %p154
        %p349 = pneg %p178
        %p350 = pneg %p175
        %p351 = pneg %p199
        %p352 = pneg %p196
        %p353 = pneg %p220
        %p354 = pneg %p217
        %p355 = pneg %p241
        %p356 = pneg %p238
        %p357 = pneg %p267
        %p358 = pneg %p264
        %s359 = smul.u32 16, %s29
        %p360 = scmp.lt.s32.totalorder %s359, 31
        %s361 = scalar_select %p360, %s359, 31
        %s362 = smul.addr %s361, 8
        %s363 = scalar_lea.vmem %s10, %s362
        %s364 = smul.u32 16, %s29
        %p365 = scmp.lt.s32.totalorder %s364, 31
        %s366 = scalar_select %p365, %s364, 31
        %s367 = smul.addr %s366, 8
        %s368 = scalar_lea.vmem %s10, %s367
        %s369 = smul.u32 16, %s29
        %s371 = smul.u32 %s29, 128
        %s372 = sshra.s32 %s371, 3
        %s373 = sand.u32 %s371, 7
        %s374 = smul.u32 %s372, 2
        %s375 = smul.addr %s374, 4
        %s376 = scalar_lea.vmem [#allocation4], %s375
        %v377 = vld [vmem:[%s376] sm:$0xff]
        %v378 = vld [vmem:[%s376 + $0x8] sm:$0xff]
        %v379 = vld [vmem:[%s376 + $0x10] sm:$0xff]
        %v380 = vld [vmem:[%s376 + $0x18] sm:$0xff]
        %v381 = vld [vmem:[%s376 + $0x20] sm:$0xff]
        %v382 = vld [vmem:[%s376 + $0x28] sm:$0xff]
        %v383 = vld [vmem:[%s376 + $0x30] sm:$0xff]
        %v384 = vld [vmem:[%s376 + $0x38] sm:$0xff]
        %v385 = vld [vmem:[%s376 + $0x40] sm:$0xff]
        %v386 = vld [vmem:[%s376 + $0x48] sm:$0xff]
        %v387 = vld [vmem:[%s376 + $0x50] sm:$0xff]
        %v388 = vld [vmem:[%s376 + $0x58] sm:$0xff]
        %v389 = vld [vmem:[%s376 + $0x60] sm:$0xff]
        %v390 = vld [vmem:[%s376 + $0x68] sm:$0xff]
        %v391 = vld [vmem:[%s376 + $0x70] sm:$0xff]
        %v392 = vld [vmem:[%s376 + $0x78] sm:$0xff]
        %p393 = scmp.eq.s32.totalorder %s28, 0
        // Predicated region
        $region65: #{net_full_forward.1} parent=59 // pred_check
          %p394 = pneg %p393
        $region66: #{net_full_forward.1} parent=59 // pred_check_branch
          %396 = sbr.rel (%p394) target = $region68
        $region67: #{net_full_forward.1} parent=59 // pred_region
          %v397 = vld [vmem:[%s1] sm:$0xf]
          %v398 = vld [vmem:[%s1 + $0x4] sm:$0xf]
          %v399 = vld [vmem:[%s1 + $0x8] sm:$0xf]
          %v400 = vld [vmem:[%s1 + $0xc] sm:$0xf]
          %v401 = vld [vmem:[%s1 + $0x10] sm:$0xf]
          %v402 = vld [vmem:[%s1 + $0x14] sm:$0xf]
          %v403 = vld [vmem:[%s1 + $0x18] sm:$0xf]
          %v404 = vld [vmem:[%s1 + $0x1c] sm:$0xf]
          %v405 = vld [vmem:[%s1 + $0x20] sm:$0xf]
          %v406 = vld [vmem:[%s1 + $0x24] sm:$0xf]
          %v407 = vld [vmem:[%s1 + $0x28] sm:$0xf]
          %v408 = vld [vmem:[%s1 + $0x2c] sm:$0xf]
          %v409 = vld [vmem:[%s1 + $0x30] sm:$0xf]
          %v410 = vld [vmem:[%s1 + $0x34] sm:$0xf]
          %v411 = vld [vmem:[%s1 + $0x38] sm:$0xf]
          %v412 = vld [vmem:[%s1 + $0x3c] sm:$0xf]
          %v413 = vld [vmem:[%s1 + $0x40] sm:$0xf]
          %v414 = vld [vmem:[%s1 + $0x44] sm:$0xf]
          %v415 = vld [vmem:[%s1 + $0x48] sm:$0xf]
          %v416 = vld [vmem:[%s1 + $0x4c] sm:$0xf]
          %v417 = vld [vmem:[%s1 + $0x50] sm:$0xf]
          %v418 = vld [vmem:[%s1 + $0x54] sm:$0xf]
          %v419 = vld [vmem:[%s1 + $0x58] sm:$0xf]
          %v420 = vld [vmem:[%s1 + $0x5c] sm:$0xf]
          %v421 = vld [vmem:[%s1 + $0x60] sm:$0xf]
          %v422 = vld [vmem:[%s1 + $0x64] sm:$0xf]
          %v423 = vld [vmem:[%s1 + $0x68] sm:$0xf]
          %v424 = vld [vmem:[%s1 + $0x6c] sm:$0xf]
          %v425 = vld [vmem:[%s1 + $0x70] sm:$0xf]
          %v426 = vld [vmem:[%s1 + $0x74] sm:$0xf]
          %v427 = vld [vmem:[%s1 + $0x78] sm:$0xf]
          %v428 = vld [vmem:[%s1 + $0x7c] sm:$0xf]
          %v445 = vunpack.c.l.b16 %v377
          %v446 = vunpack.c.h.b16 %v377
          %v447 = vunpack.c.l.b16 %v378
          %v448 = vunpack.c.h.b16 %v378
          %v449 = vunpack.c.l.b16 %v379
          %v450 = vunpack.c.h.b16 %v379
          %v451 = vunpack.c.l.b16 %v380
          %v452 = vunpack.c.h.b16 %v380
          %v453 = vunpack.c.l.b16 %v381
          %v454 = vunpack.c.h.b16 %v381
          %v455 = vunpack.c.l.b16 %v382
          %v456 = vunpack.c.h.b16 %v382
          %v457 = vunpack.c.l.b16 %v383
          %v458 = vunpack.c.h.b16 %v383
          %v459 = vunpack.c.l.b16 %v384
          %v460 = vunpack.c.h.b16 %v384
          %v461 = vunpack.c.l.b16 %v385
          %v462 = vunpack.c.h.b16 %v385
          %v463 = vunpack.c.l.b16 %v386
          %v464 = vunpack.c.h.b16 %v386
          %v465 = vunpack.c.l.b16 %v387
          %v466 = vunpack.c.h.b16 %v387
          %v467 = vunpack.c.l.b16 %v388
          %v468 = vunpack.c.h.b16 %v388
          %v469 = vunpack.c.l.b16 %v389
          %v470 = vunpack.c.h.b16 %v389
          %v471 = vunpack.c.l.b16 %v390
          %v472 = vunpack.c.h.b16 %v390
          %v473 = vunpack.c.l.b16 %v391
          %v474 = vunpack.c.h.b16 %v391
          %v475 = vunpack.c.l.b16 %v392
          %v476 = vunpack.c.h.b16 %v392
          %v477 = vpack.c.b16 %v447, %v445
          %v478 = vpack.c.b16 %v448, %v446
          %v479 = vpack.c.b16 %v451, %v449
          %v480 = vpack.c.b16 %v452, %v450
          %v481 = vpack.c.b16 %v455, %v453
          %v482 = vpack.c.b16 %v456, %v454
          %v483 = vpack.c.b16 %v459, %v457
          %v484 = vpack.c.b16 %v460, %v458
          %v485 = vpack.c.b16 %v463, %v461
          %v486 = vpack.c.b16 %v464, %v462
          %v487 = vpack.c.b16 %v467, %v465
          %v488 = vpack.c.b16 %v468, %v466
          %v489 = vpack.c.b16 %v471, %v469
          %v490 = vpack.c.b16 %v472, %v470
          %v491 = vpack.c.b16 %v475, %v473
          %v492 = vpack.c.b16 %v476, %v474
          %v541 = vunpack.c.l.b16 %v397
          %v542 = vunpack.c.l.b16 %v398
          %v543 = vunpack.c.l.b16 %v399
          %v544 = vunpack.c.l.b16 %v400
          %v545 = vunpack.c.l.b16 %v401
          %v546 = vunpack.c.l.b16 %v402
          %v547 = vunpack.c.l.b16 %v403
          %v548 = vunpack.c.l.b16 %v404
          %v549 = vunpack.c.l.b16 %v405
          %v550 = vunpack.c.l.b16 %v406
          %v551 = vunpack.c.l.b16 %v407
          %v552 = vunpack.c.l.b16 %v408
          %v553 = vunpack.c.l.b16 %v409
          %v554 = vunpack.c.l.b16 %v410
          %v555 = vunpack.c.l.b16 %v411
          %v556 = vunpack.c.l.b16 %v412
          %v557 = vunpack.c.l.b16 %v413
          %v558 = vunpack.c.l.b16 %v414
          %v559 = vunpack.c.l.b16 %v415
          %v560 = vunpack.c.l.b16 %v416
          %v561 = vunpack.c.l.b16 %v417
          %v562 = vunpack.c.l.b16 %v418
          %v563 = vunpack.c.l.b16 %v419
          %v564 = vunpack.c.l.b16 %v420
          %v565 = vunpack.c.l.b16 %v421
          %v566 = vunpack.c.l.b16 %v422
          %v567 = vunpack.c.l.b16 %v423
          %v568 = vunpack.c.l.b16 %v424
          %v569 = vunpack.c.l.b16 %v425
          %v570 = vunpack.c.l.b16 %v426
          %v571 = vunpack.c.l.b16 %v427
          %v572 = vunpack.c.l.b16 %v428
          %v573 = vpack.c.b16 %v542, %v541
          %v574 = vpack.c.b16 %v544, %v543
          %v575 = vpack.c.b16 %v546, %v545
          %v576 = vpack.c.b16 %v548, %v547
          %v577 = vpack.c.b16 %v550, %v549
          %v578 = vpack.c.b16 %v552, %v551
          %v579 = vpack.c.b16 %v554, %v553
          %v580 = vpack.c.b16 %v556, %v555
          %v581 = vpack.c.b16 %v558, %v557
          %v582 = vpack.c.b16 %v560, %v559
          %v583 = vpack.c.b16 %v562, %v561
          %v584 = vpack.c.b16 %v564, %v563
          %v585 = vpack.c.b16 %v566, %v565
          %v586 = vpack.c.b16 %v568, %v567
          %v587 = vpack.c.b16 %v570, %v569
          %v588 = vpack.c.b16 %v572, %v571
          %605 = vmatprep.subr.bf16.mxu0 0
          %606 = vmatpush1.bf16.msra.mxu0 %v580
          %607 = vmatprep.subr.bf16.mxu0 0
          %608 = vmatpush1.bf16.msra.mxu0 %v579
          %609 = vmatprep.subr.bf16.mxu0 0
          %610 = vmatpush1.bf16.msra.mxu0 %v578
          %611 = vmatprep.subr.bf16.mxu0 0
          %612 = vmatpush1.bf16.msra.mxu0 %v577
          %613 = vmatprep.subr.bf16.mxu0 0
          %614 = vmatpush1.bf16.msra.mxu0 %v576
          %615 = vmatprep.subr.bf16.mxu0 0
          %616 = vmatpush1.bf16.msra.mxu0 %v575
          %617 = vmatprep.subr.bf16.mxu0 0
          %618 = vmatpush1.bf16.msra.mxu0 %v574
          %619 = vmatprep.subr.bf16.mxu0 0
          %620 = vmatpush1.bf16.msra.mxu0 %v573
          %621 = vmatprep.subr.bf16.mxu0 0
          %622 = vmatpush2.bf16.msra.mxu0 %v588
          %623 = vmatprep.subr.bf16.mxu0 0
          %624 = vmatpush2.bf16.msra.mxu0 %v587
          %625 = vmatprep.subr.bf16.mxu0 0
          %626 = vmatpush2.bf16.msra.mxu0 %v586
          %627 = vmatprep.subr.bf16.mxu0 0
          %628 = vmatpush2.bf16.msra.mxu0 %v585
          %629 = vmatprep.subr.bf16.mxu0 0
          %630 = vmatpush2.bf16.msra.mxu0 %v584
          %631 = vmatprep.subr.bf16.mxu0 0
          %632 = vmatpush2.bf16.msra.mxu0 %v583
          %633 = vmatprep.subr.bf16.mxu0 0
          %634 = vmatpush2.bf16.msra.mxu0 %v582
          %635 = vmatprep.subr.bf16.mxu0 0
          %636 = vmatpush2.bf16.msra.mxu0 %v581
          %637 = vmatprep.mubr.bf16.mxu0 %v478
          %638 = vmatmul.mubr.bf16.gmra.mxu0 %v477
          %v639 = vpop.f32.mrf.mxu0
          %v640 = vadd.f32 0.0, %v639
          %v641 = vpop.f32.mrf.mxu0
          %v642 = vpop.f32.mrf.mxu0
          %v643 = vadd.f32 0.0, %v642
          %v644 = vpop.f32.mrf.mxu0
          %645 = vmatprep.mubr.bf16.mxu0 %v480
          %646 = vmatmul.mubr.bf16.gmra.mxu0 %v479
          %v647 = vpop.f32.mrf.mxu0
          %v648 = vadd.f32 0.0, %v647
          %v649 = vpop.f32.mrf.mxu0
          %v650 = vpop.f32.mrf.mxu0
          %v651 = vadd.f32 0.0, %v650
          %v652 = vpop.f32.mrf.mxu0
          %653 = vmatprep.mubr.bf16.mxu0 %v482
          %654 = vmatmul.mubr.bf16.gmra.mxu0 %v481
          %v655 = vpop.f32.mrf.mxu0
          %v656 = vadd.f32 0.0, %v655
          %v657 = vpop.f32.mrf.mxu0
          %v658 = vpop.f32.mrf.mxu0
          %v659 = vadd.f32 0.0, %v658
          %v660 = vpop.f32.mrf.mxu0
          %661 = vmatprep.mubr.bf16.mxu0 %v484
          %662 = vmatmul.mubr.bf16.gmra.mxu0 %v483
          %v663 = vpop.f32.mrf.mxu0
          %v664 = vadd.f32 0.0, %v663
          %v665 = vpop.f32.mrf.mxu0
          %v666 = vpop.f32.mrf.mxu0
          %v667 = vadd.f32 0.0, %v666
          %v668 = vpop.f32.mrf.mxu0
          %669 = vmatprep.mubr.bf16.mxu0 %v486
          %670 = vmatmul.mubr.bf16.gmra.mxu0 %v485
          %v671 = vpop.f32.mrf.mxu0
          %v672 = vadd.f32 0.0, %v671
          %v673 = vpop.f32.mrf.mxu0
          %v674 = vpop.f32.mrf.mxu0
          %v675 = vadd.f32 0.0, %v674
          %v676 = vpop.f32.mrf.mxu0
          %677 = vmatprep.mubr.bf16.mxu0 %v488
          %678 = vmatmul.mubr.bf16.gmra.mxu0 %v487
          %v679 = vpop.f32.mrf.mxu0
          %v680 = vadd.f32 0.0, %v679
          %v681 = vpop.f32.mrf.mxu0
          %v682 = vpop.f32.mrf.mxu0
          %v683 = vadd.f32 0.0, %v682
          %v684 = vpop.f32.mrf.mxu0
          %685 = vmatprep.mubr.bf16.mxu0 %v490
          %686 = vmatmul.mubr.bf16.gmra.mxu0 %v489
          %v687 = vpop.f32.mrf.mxu0
          %v688 = vadd.f32 0.0, %v687
          %v689 = vpop.f32.mrf.mxu0
          %v690 = vpop.f32.mrf.mxu0
          %v691 = vadd.f32 0.0, %v690
          %v692 = vpop.f32.mrf.mxu0
          %693 = vmatprep.mubr.bf16.mxu0 %v492
          %694 = vmatmul.mubr.bf16.gmra.mxu0 %v491
          %v695 = vpop.f32.mrf.mxu0
          %v696 = vadd.f32 0.0, %v695
          %v697 = vpop.f32.mrf.mxu0
          %v698 = vpop.f32.mrf.mxu0
          %v699 = vadd.f32 0.0, %v698
          %v700 = vpop.f32.mrf.mxu0
          %701 = vdwg.mxu0
          %v702 = vpack.c.bf16 %v643, %v640
          %v703 = vpack.c.bf16 %v651, %v648
          %v704 = vpack.c.bf16 %v659, %v656
          %v705 = vpack.c.bf16 %v667, %v664
          %v706 = vpack.c.bf16 %v675, %v672
          %v707 = vpack.c.bf16 %v683, %v680
          %v708 = vpack.c.bf16 %v691, %v688
          %v709 = vpack.c.bf16 %v699, %v696
          %v710 = vld [vmem:[%s2] sm:$0xf]
          %v711 = vld [vmem:[%s3] sm:$0x1]
          %v713 = vlaneseq
          %v714 = vshrl.u32 %v713, 7
          %v715 = vsub.s32 0, %v714
          %v716 = vrot.slane %v711, %v715
          %vm718 = vcmask 64512
          %v720 = vsel %vm718, %v702, 0
          %v723 = vsel %vm718, %v703, 0
          %v726 = vsel %vm718, %v704, 0
          %v729 = vsel %vm718, %v705, 0
          %v732 = vsel %vm718, %v706, 0
          %v735 = vsel %vm718, %v707, 0
          %v738 = vsel %vm718, %v708, 0
          %v741 = vsel %vm718, %v709, 0
          %vm743 = vcmask 1043456
          %v745 = vsel %vm743, %v710, 0
          %747 = vmatprep.subr.bf16.mxu0 0
          %748 = vmatpush1.bf16.msra.mxu0 0
          %749 = vmatprep.subr.bf16.mxu0 0
          %750 = vmatpush1.bf16.msra.mxu0 0
          %751 = vmatprep.subr.bf16.mxu0 0
          %752 = vmatpush1.bf16.msra.mxu0 0
          %753 = vmatprep.subr.bf16.mxu0 0
          %754 = vmatpush1.bf16.msra.mxu0 0
          %755 = vmatprep.subr.bf16.mxu0 0
          %756 = vmatpush1.bf16.msra.mxu0 0
          %757 = vmatprep.subr.bf16.mxu0 0
          %758 = vmatpush1.bf16.msra.mxu0 0
          %759 = vmatprep.subr.bf16.mxu0 0
          %760 = vmatpush1.bf16.msra.mxu0 0
          %761 = vmatprep.subr.bf16.mxu0 0
          %762 = vmatpush1.bf16.msra.mxu0 %v745
          %763 = vmatprep.subr.bf16.mxu0 0
          %764 = vmatpush2.bf16.msra.mxu0 0
          %765 = vmatprep.subr.bf16.mxu0 0
          %766 = vmatpush2.bf16.msra.mxu0 0
          %767 = vmatprep.subr.bf16.mxu0 0
          %768 = vmatpush2.bf16.msra.mxu0 0
          %769 = vmatprep.subr.bf16.mxu0 0
          %770 = vmatpush2.bf16.msra.mxu0 0
          %771 = vmatprep.subr.bf16.mxu0 0
          %772 = vmatpush2.bf16.msra.mxu0 0
          %773 = vmatprep.subr.bf16.mxu0 0
          %774 = vmatpush2.bf16.msra.mxu0 0
          %775 = vmatprep.subr.bf16.mxu0 0
          %776 = vmatpush2.bf16.msra.mxu0 0
          %777 = vmatprep.subr.bf16.mxu0 0
          %778 = vmatpush2.bf16.msra.mxu0 0
          %779 = vmatprep.mubr.bf16.mxu0 0
          %780 = vmatmul.mubr.bf16.gmra.mxu0 %v720
          %v781 = vpop.f32.mrf.mxu0
          %v782 = vadd.f32 %v716, %v781
          %v783 = vpop.f32.mrf.mxu0
          %v784 = vpop.f32.mrf.mxu0
          %v785 = vadd.f32 %v716, %v784
          %v786 = vpop.f32.mrf.mxu0
          %787 = vmatprep.mubr.bf16.mxu0 0
          %788 = vmatmul.mubr.bf16.gmra.mxu0 %v723
          %v789 = vpop.f32.mrf.mxu0
          %v790 = vadd.f32 %v716, %v789
          %v791 = vpop.f32.mrf.mxu0
          %v792 = vpop.f32.mrf.mxu0
          %v793 = vadd.f32 %v716, %v792
          %v794 = vpop.f32.mrf.mxu0
          %795 = vmatprep.mubr.bf16.mxu0 0
          %796 = vmatmul.mubr.bf16.gmra.mxu0 %v726
          %v797 = vpop.f32.mrf.mxu0
          %v798 = vadd.f32 %v716, %v797
          %v799 = vpop.f32.mrf.mxu0
          %v800 = vpop.f32.mrf.mxu0
          %v801 = vadd.f32 %v716, %v800
          %v802 = vpop.f32.mrf.mxu0
          %803 = vmatprep.mubr.bf16.mxu0 0
          %804 = vmatmul.mubr.bf16.gmra.mxu0 %v729
          %v805 = vpop.f32.mrf.mxu0
          %v806 = vadd.f32 %v716, %v805
          %v807 = vpop.f32.mrf.mxu0
          %v808 = vpop.f32.mrf.mxu0
          %v809 = vadd.f32 %v716, %v808
          %v810 = vpop.f32.mrf.mxu0
          %811 = vmatprep.mubr.bf16.mxu0 0
          %812 = vmatmul.mubr.bf16.gmra.mxu0 %v732
          %v813 = vpop.f32.mrf.mxu0
          %v814 = vadd.f32 %v716, %v813
          %v815 = vpop.f32.mrf.mxu0
          %v816 = vpop.f32.mrf.mxu0
          %v817 = vadd.f32 %v716, %v816
          %v818 = vpop.f32.mrf.mxu0
          %819 = vmatprep.mubr.bf16.mxu0 0
          %820 = vmatmul.mubr.bf16.gmra.mxu0 %v735
          %v821 = vpop.f32.mrf.mxu0
          %v822 = vadd.f32 %v716, %v821
          %v823 = vpop.f32.mrf.mxu0
          %v824 = vpop.f32.mrf.mxu0
          %v825 = vadd.f32 %v716, %v824
          %v826 = vpop.f32.mrf.mxu0
          %827 = vmatprep.mubr.bf16.mxu0 0
          %828 = vmatmul.mubr.bf16.gmra.mxu0 %v738
          %v829 = vpop.f32.mrf.mxu0
          %v830 = vadd.f32 %v716, %v829
          %v831 = vpop.f32.mrf.mxu0
          %v832 = vpop.f32.mrf.mxu0
          %v833 = vadd.f32 %v716, %v832
          %v834 = vpop.f32.mrf.mxu0
          %835 = vmatprep.mubr.bf16.mxu0 0
          %836 = vmatmul.mubr.bf16.gmra.mxu0 %v741
          %v837 = vpop.f32.mrf.mxu0
          %v838 = vadd.f32 %v716, %v837
          %v839 = vpop.f32.mrf.mxu0
          %v840 = vpop.f32.mrf.mxu0
          %v841 = vadd.f32 %v716, %v840
          %v842 = vpop.f32.mrf.mxu0
          %843 = vdwg.mxu0
          %v844 = vmax.f32 %v782, 0.0
          %v845 = vmax.f32 %v785, 0.0
          %v846 = vmax.f32 %v790, 0.0
          %v847 = vmax.f32 %v793, 0.0
          %v848 = vmax.f32 %v798, 0.0
          %v849 = vmax.f32 %v801, 0.0
          %v850 = vmax.f32 %v806, 0.0
          %v851 = vmax.f32 %v809, 0.0
          %v852 = vmax.f32 %v814, 0.0
          %v853 = vmax.f32 %v817, 0.0
          %v854 = vmax.f32 %v822, 0.0
          %v855 = vmax.f32 %v825, 0.0
          %v856 = vmax.f32 %v830, 0.0
          %v857 = vmax.f32 %v833, 0.0
          %v858 = vmax.f32 %v838, 0.0
          %v859 = vmax.f32 %v841, 0.0
          %v860 = vpack.c.bf16 %v845, %v844
          %v861 = vpack.c.bf16 %v847, %v846
          %v862 = vpack.c.bf16 %v849, %v848
          %v863 = vpack.c.bf16 %v851, %v850
          %v864 = vpack.c.bf16 %v853, %v852
          %v865 = vpack.c.bf16 %v855, %v854
          %v866 = vpack.c.bf16 %v857, %v856
          %v867 = vpack.c.bf16 %v859, %v858
          %v868 = vld [vmem:[%s4] sm:$0xf]
          %v869 = vld [vmem:[%s4 + $0x4] sm:$0xf]
          %v870 = vld [vmem:[%s4 + $0x8] sm:$0xf]
          %v871 = vld [vmem:[%s4 + $0xc] sm:$0xf]
          %v876 = vunpack.c.l.b16 %v868
          %v877 = vunpack.c.l.b16 %v869
          %v878 = vunpack.c.l.b16 %v870
          %v879 = vunpack.c.l.b16 %v871
          %v880 = vpack.c.b16 %v877, %v876
          %v881 = vpack.c.b16 %v879, %v878
          %vm884 = vcmask 261120
          %v886 = vsel %vm884, %v860, 0
          %v889 = vsel %vm884, %v861, 0
          %v892 = vsel %vm884, %v862, 0
          %v895 = vsel %vm884, %v863, 0
          %v898 = vsel %vm884, %v864, 0
          %v901 = vsel %vm884, %v865, 0
          %v904 = vsel %vm884, %v866, 0
          %v907 = vsel %vm884, %v867, 0
          %909 = vmatprep.subr.bf16.mxu0 0
          %910 = vmatpush1.bf16.msra.mxu0 0
          %911 = vmatprep.subr.bf16.mxu0 0
          %912 = vmatpush1.bf16.msra.mxu0 0
          %913 = vmatprep.subr.bf16.mxu0 0
          %914 = vmatpush1.bf16.msra.mxu0 0
          %915 = vmatprep.subr.bf16.mxu0 0
          %916 = vmatpush1.bf16.msra.mxu0 0
          %917 = vmatprep.subr.bf16.mxu0 0
          %918 = vmatpush1.bf16.msra.mxu0 0
          %919 = vmatprep.subr.bf16.mxu0 0
          %920 = vmatpush1.bf16.msra.mxu0 0
          %921 = vmatprep.subr.bf16.mxu0 0
          %922 = vmatpush1.bf16.msra.mxu0 %v881
          %923 = vmatprep.subr.bf16.mxu0 0
          %924 = vmatpush1.bf16.msra.mxu0 %v880
          %925 = vmatprep.subr.bf16.mxu0 0
          %926 = vmatpush2.bf16.msra.mxu0 0
          %927 = vmatprep.subr.bf16.mxu0 0
          %928 = vmatpush2.bf16.msra.mxu0 0
          %929 = vmatprep.subr.bf16.mxu0 0
          %930 = vmatpush2.bf16.msra.mxu0 0
          %931 = vmatprep.subr.bf16.mxu0 0
          %932 = vmatpush2.bf16.msra.mxu0 0
          %933 = vmatprep.subr.bf16.mxu0 0
          %934 = vmatpush2.bf16.msra.mxu0 0
          %935 = vmatprep.subr.bf16.mxu0 0
          %936 = vmatpush2.bf16.msra.mxu0 0
          %937 = vmatprep.subr.bf16.mxu0 0
          %938 = vmatpush2.bf16.msra.mxu0 0
          %939 = vmatprep.subr.bf16.mxu0 0
          %940 = vmatpush2.bf16.msra.mxu0 0
          %941 = vmatprep.mubr.bf16.mxu0 0
          %942 = vmatmul.mubr.bf16.gmra.mxu0 %v886
          %v943 = vpop.f32.mrf.mxu0
          %v944 = vadd.f32 0.0, %v943
          %v945 = vpop.f32.mrf.mxu0
          %v946 = vpop.f32.mrf.mxu0
          %v947 = vadd.f32 0.0, %v946
          %v948 = vpop.f32.mrf.mxu0
          %949 = vmatprep.mubr.bf16.mxu0 0
          %950 = vmatmul.mubr.bf16.gmra.mxu0 %v889
          %v951 = vpop.f32.mrf.mxu0
          %v952 = vadd.f32 0.0, %v951
          %v953 = vpop.f32.mrf.mxu0
          %v954 = vpop.f32.mrf.mxu0
          %v955 = vadd.f32 0.0, %v954
          %v956 = vpop.f32.mrf.mxu0
          %957 = vmatprep.mubr.bf16.mxu0 0
          %958 = vmatmul.mubr.bf16.gmra.mxu0 %v892
          %v959 = vpop.f32.mrf.mxu0
          %v960 = vadd.f32 0.0, %v959
          %v961 = vpop.f32.mrf.mxu0
          %v962 = vpop.f32.mrf.mxu0
          %v963 = vadd.f32 0.0, %v962
          %v964 = vpop.f32.mrf.mxu0
          %965 = vmatprep.mubr.bf16.mxu0 0
          %966 = vmatmul.mubr.bf16.gmra.mxu0 %v895
          %v967 = vpop.f32.mrf.mxu0
          %v968 = vadd.f32 0.0, %v967
          %v969 = vpop.f32.mrf.mxu0
          %v970 = vpop.f32.mrf.mxu0
          %v971 = vadd.f32 0.0, %v970
          %v972 = vpop.f32.mrf.mxu0
          %973 = vmatprep.mubr.bf16.mxu0 0
          %974 = vmatmul.mubr.bf16.gmra.mxu0 %v898
          %v975 = vpop.f32.mrf.mxu0
          %v976 = vadd.f32 0.0, %v975
          %v977 = vpop.f32.mrf.mxu0
          %v978 = vpop.f32.mrf.mxu0
          %v979 = vadd.f32 0.0, %v978
          %v980 = vpop.f32.mrf.mxu0
          %981 = vmatprep.mubr.bf16.mxu0 0
          %982 = vmatmul.mubr.bf16.gmra.mxu0 %v901
          %v983 = vpop.f32.mrf.mxu0
          %v984 = vadd.f32 0.0, %v983
          %v985 = vpop.f32.mrf.mxu0
          %v986 = vpop.f32.mrf.mxu0
          %v987 = vadd.f32 0.0, %v986
          %v988 = vpop.f32.mrf.mxu0
          %989 = vmatprep.mubr.bf16.mxu0 0
          %990 = vmatmul.mubr.bf16.gmra.mxu0 %v904
          %v991 = vpop.f32.mrf.mxu0
          %v992 = vadd.f32 0.0, %v991
          %v993 = vpop.f32.mrf.mxu0
          %v994 = vpop.f32.mrf.mxu0
          %v995 = vadd.f32 0.0, %v994
          %v996 = vpop.f32.mrf.mxu0
          %997 = vmatprep.mubr.bf16.mxu0 0
          %998 = vmatmul.mubr.bf16.gmra.mxu0 %v907
          %v999 = vpop.f32.mrf.mxu0
          %v1000 = vadd.f32 0.0, %v999
          %v1001 = vpop.f32.mrf.mxu0
          %v1002 = vpop.f32.mrf.mxu0
          %v1003 = vadd.f32 0.0, %v1002
          %v1004 = vpop.f32.mrf.mxu0
          %1005 = vdwg.mxu0
          %v1006 = vpack.c.bf16 %v947, %v944
          %v1007 = vpack.c.bf16 %v955, %v952
          %v1008 = vpack.c.bf16 %v963, %v960
          %v1009 = vpack.c.bf16 %v971, %v968
          %v1010 = vpack.c.bf16 %v979, %v976
          %v1011 = vpack.c.bf16 %v987, %v984
          %v1012 = vpack.c.bf16 %v995, %v992
          %v1013 = vpack.c.bf16 %v1003, %v1000
          %v1022 = vunpack.c.l.b16 %v1006
          %v1023 = vunpack.c.h.b16 %v1006
          %v1024 = vunpack.c.l.b16 %v1007
          %v1025 = vunpack.c.h.b16 %v1007
          %v1026 = vunpack.c.l.b16 %v1008
          %v1027 = vunpack.c.h.b16 %v1008
          %v1028 = vunpack.c.l.b16 %v1009
          %v1029 = vunpack.c.h.b16 %v1009
          %v1030 = vunpack.c.l.b16 %v1010
          %v1031 = vunpack.c.h.b16 %v1010
          %v1032 = vunpack.c.l.b16 %v1011
          %v1033 = vunpack.c.h.b16 %v1011
          %v1034 = vunpack.c.l.b16 %v1012
          %v1035 = vunpack.c.h.b16 %v1012
          %v1036 = vunpack.c.l.b16 %v1013
          %v1037 = vunpack.c.h.b16 %v1013
          %v1038 = vpack.c.b16 %v1022, %v1022
          %v1039 = vpack.c.b16 %v1023, %v1023
          %v1040 = vpack.c.b16 %v1024, %v1024
          %v1041 = vpack.c.b16 %v1025, %v1025
          %v1042 = vpack.c.b16 %v1026, %v1026
          %v1043 = vpack.c.b16 %v1027, %v1027
          %v1044 = vpack.c.b16 %v1028, %v1028
          %v1045 = vpack.c.b16 %v1029, %v1029
          %v1046 = vpack.c.b16 %v1030, %v1030
          %v1047 = vpack.c.b16 %v1031, %v1031
          %v1048 = vpack.c.b16 %v1032, %v1032
          %v1049 = vpack.c.b16 %v1033, %v1033
          %v1050 = vpack.c.b16 %v1034, %v1034
          %v1051 = vpack.c.b16 %v1035, %v1035
          %v1052 = vpack.c.b16 %v1036, %v1036
          %v1053 = vpack.c.b16 %v1037, %v1037
          %s1070 = smul.addr %s372, 4
          %s1071 = scalar_lea.vmem [#allocation2], %s1070
          %vm1072 = vcmask 257024
          %1073 = vst.msk [vmem:[%s1071] sm:$0xf] %vm1072, %v1038
          %1074 = vst.msk [vmem:[%s1071 + $0x4] sm:$0xf] %vm1072, %v1039
          %1075 = vst.msk [vmem:[%s1071 + $0x8] sm:$0xf] %vm1072, %v1040
          %1076 = vst.msk [vmem:[%s1071 + $0xc] sm:$0xf] %vm1072, %v1041
          %1077 = vst.msk [vmem:[%s1071 + $0x10] sm:$0xf] %vm1072, %v1042
          %1078 = vst.msk [vmem:[%s1071 + $0x14] sm:$0xf] %vm1072, %v1043
          %1079 = vst.msk [vmem:[%s1071 + $0x18] sm:$0xf] %vm1072, %v1044
          %1080 = vst.msk [vmem:[%s1071 + $0x1c] sm:$0xf] %vm1072, %v1045
          %1081 = vst.msk [vmem:[%s1071 + $0x20] sm:$0xf] %vm1072, %v1046
          %1082 = vst.msk [vmem:[%s1071 + $0x24] sm:$0xf] %vm1072, %v1047
          %1083 = vst.msk [vmem:[%s1071 + $0x28] sm:$0xf] %vm1072, %v1048
          %1084 = vst.msk [vmem:[%s1071 + $0x2c] sm:$0xf] %vm1072, %v1049
          %1085 = vst.msk [vmem:[%s1071 + $0x30] sm:$0xf] %vm1072, %v1050
          %1086 = vst.msk [vmem:[%s1071 + $0x34] sm:$0xf] %vm1072, %v1051
          %1087 = vst.msk [vmem:[%s1071 + $0x38] sm:$0xf] %vm1072, %v1052
          %1088 = vst.msk [vmem:[%s1071 + $0x3c] sm:$0xf] %vm1072, %v1053
          %vm1089 = vcmask 7168
          %1090 = vst.msk [vmem:[%s368] sm:$0xff] %vm1089, 0.0
          %1091 = vst.msk [vmem:[%s368 + $0x8] sm:$0xff] %vm1089, 0.0
          %1092 = vst.msk [vmem:[%s368 + $0x10] sm:$0xff] %vm1089, 0.0
          %1093 = vst.msk [vmem:[%s368 + $0x18] sm:$0xff] %vm1089, 0.0
          %1094 = vst.msk [vmem:[%s368 + $0x20] sm:$0xff] %vm1089, 0.0
          %1095 = vst.msk [vmem:[%s368 + $0x28] sm:$0xff] %vm1089, 0.0
          %1096 = vst.msk [vmem:[%s368 + $0x30] sm:$0xff] %vm1089, 0.0
          %1097 = vst.msk [vmem:[%s368 + $0x38] sm:$0xff] %vm1089, 0.0
          %1098 = vst.msk [vmem:[%s368 + $0x40] sm:$0xff] %vm1089, 0.0
          %1099 = vst.msk [vmem:[%s368 + $0x48] sm:$0xff] %vm1089, 0.0
          %1100 = vst.msk [vmem:[%s368 + $0x50] sm:$0xff] %vm1089, 0.0
          %1101 = vst.msk [vmem:[%s368 + $0x58] sm:$0xff] %vm1089, 0.0
          %1102 = vst.msk [vmem:[%s368 + $0x60] sm:$0xff] %vm1089, 0.0
          %1103 = vst.msk [vmem:[%s368 + $0x68] sm:$0xff] %vm1089, 0.0
          %1104 = vst.msk [vmem:[%s368 + $0x70] sm:$0xff] %vm1089, 0.0
          %1105 = vst.msk [vmem:[%s368 + $0x78] sm:$0xff] %vm1089, 0.0
        $region68: #{net_full_forward.1} parent=59 // pred_fallthru
          _
        %p1106 = scmp.eq.s32.totalorder %s28, 1
        // Predicated region
        $region69: #{net_full_forward.1} parent=59 // pred_check
          %p1107 = pneg %p1106
        $region70: #{net_full_forward.1} parent=59 // pred_check_branch
          %1109 = sbr.rel (%p1107) target = $region72
        $region71: #{net_full_forward.1} parent=59 // pred_region
          %v1110 = vld [vmem:[#allocation2] sm:$0xf]
          %v1111 = vld [vmem:[#allocation2 + $0x4] sm:$0xf]
          %v1112 = vld [vmem:[#allocation2 + $0x8] sm:$0xf]
          %v1113 = vld [vmem:[#allocation2 + $0xc] sm:$0xf]
          %v1114 = vld [vmem:[#allocation2 + $0x10] sm:$0xf]
          %v1115 = vld [vmem:[#allocation2 + $0x14] sm:$0xf]
          %v1116 = vld [vmem:[#allocation2 + $0x18] sm:$0xf]
          %v1117 = vld [vmem:[#allocation2 + $0x1c] sm:$0xf]
          %v1118 = vld [vmem:[#allocation2 + $0x20] sm:$0xf]
          %v1119 = vld [vmem:[#allocation2 + $0x24] sm:$0xf]
          %v1120 = vld [vmem:[#allocation2 + $0x28] sm:$0xf]
          %v1121 = vld [vmem:[#allocation2 + $0x2c] sm:$0xf]
          %v1122 = vld [vmem:[#allocation2 + $0x30] sm:$0xf]
          %v1123 = vld [vmem:[#allocation2 + $0x34] sm:$0xf]
          %v1124 = vld [vmem:[#allocation2 + $0x38] sm:$0xf]
          %v1125 = vld [vmem:[#allocation2 + $0x3c] sm:$0xf]
          %v1126 = vld [vmem:[#allocation2 + $0x40] sm:$0xf]
          %v1127 = vld [vmem:[#allocation2 + $0x44] sm:$0xf]
          %v1128 = vld [vmem:[#allocation2 + $0x48] sm:$0xf]
          %v1129 = vld [vmem:[#allocation2 + $0x4c] sm:$0xf]
          %v1130 = vld [vmem:[#allocation2 + $0x50] sm:$0xf]
          %v1131 = vld [vmem:[#allocation2 + $0x54] sm:$0xf]
          %v1132 = vld [vmem:[#allocation2 + $0x58] sm:$0xf]
          %v1133 = vld [vmem:[#allocation2 + $0x5c] sm:$0xf]
          %v1134 = vld [vmem:[#allocation2 + $0x60] sm:$0xf]
          %v1135 = vld [vmem:[#allocation2 + $0x64] sm:$0xf]
          %v1136 = vld [vmem:[#allocation2 + $0x68] sm:$0xf]
          %v1137 = vld [vmem:[#allocation2 + $0x6c] sm:$0xf]
          %v1138 = vld [vmem:[#allocation2 + $0x70] sm:$0xf]
          %v1139 = vld [vmem:[#allocation2 + $0x74] sm:$0xf]
          %v1140 = vld [vmem:[#allocation2 + $0x78] sm:$0xf]
          %v1141 = vld [vmem:[#allocation2 + $0x7c] sm:$0xf]
          %v1142 = vld [vmem:[%s5] sm:$0x1]
          %v1144 = vlaneseq
          %v1145 = vshrl.u32 %v1144, 7
          %v1146 = vsub.s32 0, %v1145
          %v1147 = vrot.slane %v1142, %v1146
          %v1165 = vunpack.c.l.b16 %v377
          %v1166 = vunpack.c.h.b16 %v377
          %v1167 = vunpack.c.l.b16 %v378
          %v1168 = vunpack.c.h.b16 %v378
          %v1169 = vunpack.c.l.b16 %v379
          %v1170 = vunpack.c.h.b16 %v379
          %v1171 = vunpack.c.l.b16 %v380
          %v1172 = vunpack.c.h.b16 %v380
          %v1173 = vunpack.c.l.b16 %v381
          %v1174 = vunpack.c.h.b16 %v381
          %v1175 = vunpack.c.l.b16 %v382
          %v1176 = vunpack.c.h.b16 %v382
          %v1177 = vunpack.c.l.b16 %v383
          %v1178 = vunpack.c.h.b16 %v383
          %v1179 = vunpack.c.l.b16 %v384
          %v1180 = vunpack.c.h.b16 %v384
          %v1181 = vunpack.c.l.b16 %v385
          %v1182 = vunpack.c.h.b16 %v385
          %v1183 = vunpack.c.l.b16 %v386
          %v1184 = vunpack.c.h.b16 %v386
          %v1185 = vunpack.c.l.b16 %v387
          %v1186 = vunpack.c.h.b16 %v387
          %v1187 = vunpack.c.l.b16 %v388
          %v1188 = vunpack.c.h.b16 %v388
          %v1189 = vunpack.c.l.b16 %v389
          %v1190 = vunpack.c.h.b16 %v389
          %v1191 = vunpack.c.l.b16 %v390
          %v1192 = vunpack.c.h.b16 %v390
          %v1193 = vunpack.c.l.b16 %v391
          %v1194 = vunpack.c.h.b16 %v391
          %v1195 = vunpack.c.l.b16 %v392
          %v1196 = vunpack.c.h.b16 %v392
          %v1197 = vpack.c.b16 %v1167, %v1165
          %v1198 = vpack.c.b16 %v1168, %v1166
          %v1199 = vpack.c.b16 %v1171, %v1169
          %v1200 = vpack.c.b16 %v1172, %v1170
          %v1201 = vpack.c.b16 %v1175, %v1173
          %v1202 = vpack.c.b16 %v1176, %v1174
          %v1203 = vpack.c.b16 %v1179, %v1177
          %v1204 = vpack.c.b16 %v1180, %v1178
          %v1205 = vpack.c.b16 %v1183, %v1181
          %v1206 = vpack.c.b16 %v1184, %v1182
          %v1207 = vpack.c.b16 %v1187, %v1185
          %v1208 = vpack.c.b16 %v1188, %v1186
          %v1209 = vpack.c.b16 %v1191, %v1189
          %v1210 = vpack.c.b16 %v1192, %v1190
          %v1211 = vpack.c.b16 %v1195, %v1193
          %v1212 = vpack.c.b16 %v1196, %v1194
          %v1261 = vunpack.c.l.b16 %v1110
          %v1262 = vunpack.c.l.b16 %v1111
          %v1263 = vunpack.c.l.b16 %v1112
          %v1264 = vunpack.c.l.b16 %v1113
          %v1265 = vunpack.c.l.b16 %v1114
          %v1266 = vunpack.c.l.b16 %v1115
          %v1267 = vunpack.c.l.b16 %v1116
          %v1268 = vunpack.c.l.b16 %v1117
          %v1269 = vunpack.c.l.b16 %v1118
          %v1270 = vunpack.c.l.b16 %v1119
          %v1271 = vunpack.c.l.b16 %v1120
          %v1272 = vunpack.c.l.b16 %v1121
          %v1273 = vunpack.c.l.b16 %v1122
          %v1274 = vunpack.c.l.b16 %v1123
          %v1275 = vunpack.c.l.b16 %v1124
          %v1276 = vunpack.c.l.b16 %v1125
          %v1277 = vunpack.c.l.b16 %v1126
          %v1278 = vunpack.c.l.b16 %v1127
          %v1279 = vunpack.c.l.b16 %v1128
          %v1280 = vunpack.c.l.b16 %v1129
          %v1281 = vunpack.c.l.b16 %v1130
          %v1282 = vunpack.c.l.b16 %v1131
          %v1283 = vunpack.c.l.b16 %v1132
          %v1284 = vunpack.c.l.b16 %v1133
          %v1285 = vunpack.c.l.b16 %v1134
          %v1286 = vunpack.c.l.b16 %v1135
          %v1287 = vunpack.c.l.b16 %v1136
          %v1288 = vunpack.c.l.b16 %v1137
          %v1289 = vunpack.c.l.b16 %v1138
          %v1290 = vunpack.c.l.b16 %v1139
          %v1291 = vunpack.c.l.b16 %v1140
          %v1292 = vunpack.c.l.b16 %v1141
          %v1293 = vpack.c.b16 %v1262, %v1261
          %v1294 = vpack.c.b16 %v1264, %v1263
          %v1295 = vpack.c.b16 %v1266, %v1265
          %v1296 = vpack.c.b16 %v1268, %v1267
          %v1297 = vpack.c.b16 %v1270, %v1269
          %v1298 = vpack.c.b16 %v1272, %v1271
          %v1299 = vpack.c.b16 %v1274, %v1273
          %v1300 = vpack.c.b16 %v1276, %v1275
          %v1301 = vpack.c.b16 %v1278, %v1277
          %v1302 = vpack.c.b16 %v1280, %v1279
          %v1303 = vpack.c.b16 %v1282, %v1281
          %v1304 = vpack.c.b16 %v1284, %v1283
          %v1305 = vpack.c.b16 %v1286, %v1285
          %v1306 = vpack.c.b16 %v1288, %v1287
          %v1307 = vpack.c.b16 %v1290, %v1289
          %v1308 = vpack.c.b16 %v1292, %v1291
          %1325 = vmatprep.subr.bf16.mxu0 0
          %1326 = vmatpush1.bf16.msra.mxu0 %v1300
          %1327 = vmatprep.subr.bf16.mxu0 0
          %1328 = vmatpush1.bf16.msra.mxu0 %v1299
          %1329 = vmatprep.subr.bf16.mxu0 0
          %1330 = vmatpush1.bf16.msra.mxu0 %v1298
          %1331 = vmatprep.subr.bf16.mxu0 0
          %1332 = vmatpush1.bf16.msra.mxu0 %v1297
          %1333 = vmatprep.subr.bf16.mxu0 0
          %1334 = vmatpush1.bf16.msra.mxu0 %v1296
          %1335 = vmatprep.subr.bf16.mxu0 0
          %1336 = vmatpush1.bf16.msra.mxu0 %v1295
          %1337 = vmatprep.subr.bf16.mxu0 0
          %1338 = vmatpush1.bf16.msra.mxu0 %v1294
          %1339 = vmatprep.subr.bf16.mxu0 0
          %1340 = vmatpush1.bf16.msra.mxu0 %v1293
          %1341 = vmatprep.subr.bf16.mxu0 0
          %1342 = vmatpush2.bf16.msra.mxu0 %v1308
          %1343 = vmatprep.subr.bf16.mxu0 0
          %1344 = vmatpush2.bf16.msra.mxu0 %v1307
          %1345 = vmatprep.subr.bf16.mxu0 0
          %1346 = vmatpush2.bf16.msra.mxu0 %v1306
          %1347 = vmatprep.subr.bf16.mxu0 0
          %1348 = vmatpush2.bf16.msra.mxu0 %v1305
          %1349 = vmatprep.subr.bf16.mxu0 0
          %1350 = vmatpush2.bf16.msra.mxu0 %v1304
          %1351 = vmatprep.subr.bf16.mxu0 0
          %1352 = vmatpush2.bf16.msra.mxu0 %v1303
          %1353 = vmatprep.subr.bf16.mxu0 0
          %1354 = vmatpush2.bf16.msra.mxu0 %v1302
          %1355 = vmatprep.subr.bf16.mxu0 0
          %1356 = vmatpush2.bf16.msra.mxu0 %v1301
          %1357 = vmatprep.mubr.bf16.mxu0 %v1198
          %1358 = vmatmul.mubr.bf16.gmra.mxu0 %v1197
          %v1359 = vpop.f32.mrf.mxu0
          %v1360 = vadd.f32 %v1147, %v1359
          %v1361 = vpop.f32.mrf.mxu0
          %v1362 = vpop.f32.mrf.mxu0
          %v1363 = vadd.f32 %v1147, %v1362
          %v1364 = vpop.f32.mrf.mxu0
          %1365 = vmatprep.mubr.bf16.mxu0 %v1200
          %1366 = vmatmul.mubr.bf16.gmra.mxu0 %v1199
          %v1367 = vpop.f32.mrf.mxu0
          %v1368 = vadd.f32 %v1147, %v1367
          %v1369 = vpop.f32.mrf.mxu0
          %v1370 = vpop.f32.mrf.mxu0
          %v1371 = vadd.f32 %v1147, %v1370
          %v1372 = vpop.f32.mrf.mxu0
          %1373 = vmatprep.mubr.bf16.mxu0 %v1202
          %1374 = vmatmul.mubr.bf16.gmra.mxu0 %v1201
          %v1375 = vpop.f32.mrf.mxu0
          %v1376 = vadd.f32 %v1147, %v1375
          %v1377 = vpop.f32.mrf.mxu0
          %v1378 = vpop.f32.mrf.mxu0
          %v1379 = vadd.f32 %v1147, %v1378
          %v1380 = vpop.f32.mrf.mxu0
          %1381 = vmatprep.mubr.bf16.mxu0 %v1204
          %1382 = vmatmul.mubr.bf16.gmra.mxu0 %v1203
          %v1383 = vpop.f32.mrf.mxu0
          %v1384 = vadd.f32 %v1147, %v1383
          %v1385 = vpop.f32.mrf.mxu0
          %v1386 = vpop.f32.mrf.mxu0
          %v1387 = vadd.f32 %v1147, %v1386
          %v1388 = vpop.f32.mrf.mxu0
          %1389 = vmatprep.mubr.bf16.mxu0 %v1206
          %1390 = vmatmul.mubr.bf16.gmra.mxu0 %v1205
          %v1391 = vpop.f32.mrf.mxu0
          %v1392 = vadd.f32 %v1147, %v1391
          %v1393 = vpop.f32.mrf.mxu0
          %v1394 = vpop.f32.mrf.mxu0
          %v1395 = vadd.f32 %v1147, %v1394
          %v1396 = vpop.f32.mrf.mxu0
          %1397 = vmatprep.mubr.bf16.mxu0 %v1208
          %1398 = vmatmul.mubr.bf16.gmra.mxu0 %v1207
          %v1399 = vpop.f32.mrf.mxu0
          %v1400 = vadd.f32 %v1147, %v1399
          %v1401 = vpop.f32.mrf.mxu0
          %v1402 = vpop.f32.mrf.mxu0
          %v1403 = vadd.f32 %v1147, %v1402
          %v1404 = vpop.f32.mrf.mxu0
          %1405 = vmatprep.mubr.bf16.mxu0 %v1210
          %1406 = vmatmul.mubr.bf16.gmra.mxu0 %v1209
          %v1407 = vpop.f32.mrf.mxu0
          %v1408 = vadd.f32 %v1147, %v1407
          %v1409 = vpop.f32.mrf.mxu0
          %v1410 = vpop.f32.mrf.mxu0
          %v1411 = vadd.f32 %v1147, %v1410
          %v1412 = vpop.f32.mrf.mxu0
          %1413 = vmatprep.mubr.bf16.mxu0 %v1212
          %1414 = vmatmul.mubr.bf16.gmra.mxu0 %v1211
          %v1415 = vpop.f32.mrf.mxu0
          %v1416 = vadd.f32 %v1147, %v1415
          %v1417 = vpop.f32.mrf.mxu0
          %v1418 = vpop.f32.mrf.mxu0
          %v1419 = vadd.f32 %v1147, %v1418
          %v1420 = vpop.f32.mrf.mxu0
          %1421 = vdwg.mxu0
          %v1422 = vmax.f32 %v1360, 0.0
          %v1423 = vmax.f32 %v1363, 0.0
          %v1424 = vmax.f32 %v1368, 0.0
          %v1425 = vmax.f32 %v1371, 0.0
          %v1426 = vmax.f32 %v1376, 0.0
          %v1427 = vmax.f32 %v1379, 0.0
          %v1428 = vmax.f32 %v1384, 0.0
          %v1429 = vmax.f32 %v1387, 0.0
          %v1430 = vmax.f32 %v1392, 0.0
          %v1431 = vmax.f32 %v1395, 0.0
          %v1432 = vmax.f32 %v1400, 0.0
          %v1433 = vmax.f32 %v1403, 0.0
          %v1434 = vmax.f32 %v1408, 0.0
          %v1435 = vmax.f32 %v1411, 0.0
          %v1436 = vmax.f32 %v1416, 0.0
          %v1437 = vmax.f32 %v1419, 0.0
          %v1438 = vpack.c.bf16 %v1423, %v1422
          %v1439 = vpack.c.bf16 %v1425, %v1424
          %v1440 = vpack.c.bf16 %v1427, %v1426
          %v1441 = vpack.c.bf16 %v1429, %v1428
          %v1442 = vpack.c.bf16 %v1431, %v1430
          %v1443 = vpack.c.bf16 %v1433, %v1432
          %v1444 = vpack.c.bf16 %v1435, %v1434
          %v1445 = vpack.c.bf16 %v1437, %v1436
          %v1446 = vld [vmem:[%s6] sm:$0xf]
          %v1447 = vld [vmem:[%s6 + $0x4] sm:$0xf]
          %v1448 = vld [vmem:[%s6 + $0x8] sm:$0xf]
          %v1449 = vld [vmem:[%s6 + $0xc] sm:$0xf]
          %v1450 = vld [vmem:[%s7] sm:$0x1]
          %v1452 = vlaneseq
          %v1453 = vshrl.u32 %v1452, 7
          %v1454 = vsub.s32 0, %v1453
          %v1455 = vrot.slane %v1450, %v1454
          %v1461 = vunpack.c.l.b16 %v1446
          %v1462 = vunpack.c.l.b16 %v1447
          %v1463 = vunpack.c.l.b16 %v1448
          %v1464 = vunpack.c.l.b16 %v1449
          %v1465 = vpack.c.b16 %v1462, %v1461
          %v1466 = vpack.c.b16 %v1464, %v1463
          %vm1469 = vcmask 261120
          %v1471 = vsel %vm1469, %v1438, 0
          %v1474 = vsel %vm1469, %v1439, 0
          %v1477 = vsel %vm1469, %v1440, 0
          %v1480 = vsel %vm1469, %v1441, 0
          %v1483 = vsel %vm1469, %v1442, 0
          %v1486 = vsel %vm1469, %v1443, 0
          %v1489 = vsel %vm1469, %v1444, 0
          %v1492 = vsel %vm1469, %v1445, 0
          %1494 = vmatprep.subr.bf16.mxu0 0
          %1495 = vmatpush1.bf16.msra.mxu0 0
          %1496 = vmatprep.subr.bf16.mxu0 0
          %1497 = vmatpush1.bf16.msra.mxu0 0
          %1498 = vmatprep.subr.bf16.mxu0 0
          %1499 = vmatpush1.bf16.msra.mxu0 0
          %1500 = vmatprep.subr.bf16.mxu0 0
          %1501 = vmatpush1.bf16.msra.mxu0 0
          %1502 = vmatprep.subr.bf16.mxu0 0
          %1503 = vmatpush1.bf16.msra.mxu0 0
          %1504 = vmatprep.subr.bf16.mxu0 0
          %1505 = vmatpush1.bf16.msra.mxu0 0
          %1506 = vmatprep.subr.bf16.mxu0 0
          %1507 = vmatpush1.bf16.msra.mxu0 %v1466
          %1508 = vmatprep.subr.bf16.mxu0 0
          %1509 = vmatpush1.bf16.msra.mxu0 %v1465
          %1510 = vmatprep.subr.bf16.mxu0 0
          %1511 = vmatpush2.bf16.msra.mxu0 0
          %1512 = vmatprep.subr.bf16.mxu0 0
          %1513 = vmatpush2.bf16.msra.mxu0 0
          %1514 = vmatprep.subr.bf16.mxu0 0
          %1515 = vmatpush2.bf16.msra.mxu0 0
          %1516 = vmatprep.subr.bf16.mxu0 0
          %1517 = vmatpush2.bf16.msra.mxu0 0
          %1518 = vmatprep.subr.bf16.mxu0 0
          %1519 = vmatpush2.bf16.msra.mxu0 0
          %1520 = vmatprep.subr.bf16.mxu0 0
          %1521 = vmatpush2.bf16.msra.mxu0 0
          %1522 = vmatprep.subr.bf16.mxu0 0
          %1523 = vmatpush2.bf16.msra.mxu0 0
          %1524 = vmatprep.subr.bf16.mxu0 0
          %1525 = vmatpush2.bf16.msra.mxu0 0
          %1526 = vmatprep.mubr.bf16.mxu0 0
          %1527 = vmatmul.mubr.bf16.gmra.mxu0 %v1471
          %v1528 = vpop.f32.mrf.mxu0
          %v1529 = vadd.f32 %v1455, %v1528
          %v1530 = vpop.f32.mrf.mxu0
          %v1531 = vpop.f32.mrf.mxu0
          %v1532 = vadd.f32 %v1455, %v1531
          %v1533 = vpop.f32.mrf.mxu0
          %1534 = vmatprep.mubr.bf16.mxu0 0
          %1535 = vmatmul.mubr.bf16.gmra.mxu0 %v1474
          %v1536 = vpop.f32.mrf.mxu0
          %v1537 = vadd.f32 %v1455, %v1536
          %v1538 = vpop.f32.mrf.mxu0
          %v1539 = vpop.f32.mrf.mxu0
          %v1540 = vadd.f32 %v1455, %v1539
          %v1541 = vpop.f32.mrf.mxu0
          %1542 = vmatprep.mubr.bf16.mxu0 0
          %1543 = vmatmul.mubr.bf16.gmra.mxu0 %v1477
          %v1544 = vpop.f32.mrf.mxu0
          %v1545 = vadd.f32 %v1455, %v1544
          %v1546 = vpop.f32.mrf.mxu0
          %v1547 = vpop.f32.mrf.mxu0
          %v1548 = vadd.f32 %v1455, %v1547
          %v1549 = vpop.f32.mrf.mxu0
          %1550 = vmatprep.mubr.bf16.mxu0 0
          %1551 = vmatmul.mubr.bf16.gmra.mxu0 %v1480
          %v1552 = vpop.f32.mrf.mxu0
          %v1553 = vadd.f32 %v1455, %v1552
          %v1554 = vpop.f32.mrf.mxu0
          %v1555 = vpop.f32.mrf.mxu0
          %v1556 = vadd.f32 %v1455, %v1555
          %v1557 = vpop.f32.mrf.mxu0
          %1558 = vmatprep.mubr.bf16.mxu0 0
          %1559 = vmatmul.mubr.bf16.gmra.mxu0 %v1483
          %v1560 = vpop.f32.mrf.mxu0
          %v1561 = vadd.f32 %v1455, %v1560
          %v1562 = vpop.f32.mrf.mxu0
          %v1563 = vpop.f32.mrf.mxu0
          %v1564 = vadd.f32 %v1455, %v1563
          %v1565 = vpop.f32.mrf.mxu0
          %1566 = vmatprep.mubr.bf16.mxu0 0
          %1567 = vmatmul.mubr.bf16.gmra.mxu0 %v1486
          %v1568 = vpop.f32.mrf.mxu0
          %v1569 = vadd.f32 %v1455, %v1568
          %v1570 = vpop.f32.mrf.mxu0
          %v1571 = vpop.f32.mrf.mxu0
          %v1572 = vadd.f32 %v1455, %v1571
          %v1573 = vpop.f32.mrf.mxu0
          %1574 = vmatprep.mubr.bf16.mxu0 0
          %1575 = vmatmul.mubr.bf16.gmra.mxu0 %v1489
          %v1576 = vpop.f32.mrf.mxu0
          %v1577 = vadd.f32 %v1455, %v1576
          %v1578 = vpop.f32.mrf.mxu0
          %v1579 = vpop.f32.mrf.mxu0
          %v1580 = vadd.f32 %v1455, %v1579
          %v1581 = vpop.f32.mrf.mxu0
          %1582 = vmatprep.mubr.bf16.mxu0 0
          %1583 = vmatmul.mubr.bf16.gmra.mxu0 %v1492
          %v1584 = vpop.f32.mrf.mxu0
          %v1585 = vadd.f32 %v1455, %v1584
          %v1586 = vpop.f32.mrf.mxu0
          %v1587 = vpop.f32.mrf.mxu0
          %v1588 = vadd.f32 %v1455, %v1587
          %v1589 = vpop.f32.mrf.mxu0
          %1590 = vdwg.mxu0
          %v1591 = vmax.f32 %v1529, 0.0
          %v1592 = vmax.f32 %v1532, 0.0
          %v1593 = vmax.f32 %v1537, 0.0
          %v1594 = vmax.f32 %v1540, 0.0
          %v1595 = vmax.f32 %v1545, 0.0
          %v1596 = vmax.f32 %v1548, 0.0
          %v1597 = vmax.f32 %v1553, 0.0
          %v1598 = vmax.f32 %v1556, 0.0
          %v1599 = vmax.f32 %v1561, 0.0
          %v1600 = vmax.f32 %v1564, 0.0
          %v1601 = vmax.f32 %v1569, 0.0
          %v1602 = vmax.f32 %v1572, 0.0
          %v1603 = vmax.f32 %v1577, 0.0
          %v1604 = vmax.f32 %v1580, 0.0
          %v1605 = vmax.f32 %v1585, 0.0
          %v1606 = vmax.f32 %v1588, 0.0
          %v1607 = vld [vmem:[%s8] sm:$0x1]
          %v1609 = vlaneseq
          %v1610 = vshrl.u32 %v1609, 7
          %v1611 = vsub.s32 0, %v1610
          %v1612 = vrot.slane %v1607, %v1611
          %v1614 = vmul.f32 %v1591, %v1612
          %v1615 = vmul.f32 %v1592, %v1612
          %v1616 = vmul.f32 %v1593, %v1612
          %v1617 = vmul.f32 %v1594, %v1612
          %v1618 = vmul.f32 %v1595, %v1612
          %v1619 = vmul.f32 %v1596, %v1612
          %v1620 = vmul.f32 %v1597, %v1612
          %v1621 = vmul.f32 %v1598, %v1612
          %v1622 = vmul.f32 %v1599, %v1612
          %v1623 = vmul.f32 %v1600, %v1612
          %v1624 = vmul.f32 %v1601, %v1612
          %v1625 = vmul.f32 %v1602, %v1612
          %v1626 = vmul.f32 %v1603, %v1612
          %v1627 = vmul.f32 %v1604, %v1612
          %v1628 = vmul.f32 %v1605, %v1612
          %v1629 = vmul.f32 %v1606, %v1612
          %v1630 = vsel %vm1469, %v1614, 0.0
          %1631 = vadd.xlane.f32.xlu0 %v1630
          %v1632 = vpop.xlane.xlu0 %1631
          %v1633 = vsel %vm1469, %v1615, 0.0
          %1634 = vadd.xlane.f32.xlu0 %v1633
          %v1635 = vpop.xlane.xlu0 %1634
          %v1636 = vsel %vm1469, %v1616, 0.0
          %1637 = vadd.xlane.f32.xlu0 %v1636
          %v1638 = vpop.xlane.xlu0 %1637
          %v1639 = vsel %vm1469, %v1617, 0.0
          %1640 = vadd.xlane.f32.xlu0 %v1639
          %v1641 = vpop.xlane.xlu0 %1640
          %v1642 = vsel %vm1469, %v1618, 0.0
          %1643 = vadd.xlane.f32.xlu0 %v1642
          %v1644 = vpop.xlane.xlu0 %1643
          %v1645 = vsel %vm1469, %v1619, 0.0
          %1646 = vadd.xlane.f32.xlu0 %v1645
          %v1647 = vpop.xlane.xlu0 %1646
          %v1648 = vsel %vm1469, %v1620, 0.0
          %1649 = vadd.xlane.f32.xlu0 %v1648
          %v1650 = vpop.xlane.xlu0 %1649
          %v1651 = vsel %vm1469, %v1621, 0.0
          %1652 = vadd.xlane.f32.xlu0 %v1651
          %v1653 = vpop.xlane.xlu0 %1652
          %v1654 = vsel %vm1469, %v1622, 0.0
          %1655 = vadd.xlane.f32.xlu0 %v1654
          %v1656 = vpop.xlane.xlu0 %1655
          %v1657 = vsel %vm1469, %v1623, 0.0
          %1658 = vadd.xlane.f32.xlu0 %v1657
          %v1659 = vpop.xlane.xlu0 %1658
          %v1660 = vsel %vm1469, %v1624, 0.0
          %1661 = vadd.xlane.f32.xlu0 %v1660
          %v1662 = vpop.xlane.xlu0 %1661
          %v1663 = vsel %vm1469, %v1625, 0.0
          %1664 = vadd.xlane.f32.xlu0 %v1663
          %v1665 = vpop.xlane.xlu0 %1664
          %v1666 = vsel %vm1469, %v1626, 0.0
          %1667 = vadd.xlane.f32.xlu0 %v1666
          %v1668 = vpop.xlane.xlu0 %1667
          %v1669 = vsel %vm1469, %v1627, 0.0
          %1670 = vadd.xlane.f32.xlu0 %v1669
          %v1671 = vpop.xlane.xlu0 %1670
          %v1672 = vsel %vm1469, %v1628, 0.0
          %1673 = vadd.xlane.f32.xlu0 %v1672
          %v1674 = vpop.xlane.xlu0 %1673
          %v1675 = vsel %vm1469, %v1629, 0.0
          %1676 = vadd.xlane.f32.xlu0 %v1675
          %v1677 = vpop.xlane.xlu0 %1676
          %v1678 = vld [vmem:[#allocation3] sm:$0x1]
          %v1680 = vlaneseq
          %v1681 = vshrl.u32 %v1680, 7
          %v1682 = vsub.s32 0, %v1681
          %v1683 = vrot.slane %v1678, %v1682
          %v1685 = vadd.f32 %v1632, %v1683
          %v1686 = vadd.f32 %v1635, %v1683
          %v1687 = vadd.f32 %v1638, %v1683
          %v1688 = vadd.f32 %v1641, %v1683
          %v1689 = vadd.f32 %v1644, %v1683
          %v1690 = vadd.f32 %v1647, %v1683
          %v1691 = vadd.f32 %v1650, %v1683
          %v1692 = vadd.f32 %v1653, %v1683
          %v1693 = vadd.f32 %v1656, %v1683
          %v1694 = vadd.f32 %v1659, %v1683
          %v1695 = vadd.f32 %v1662, %v1683
          %v1696 = vadd.f32 %v1665, %v1683
          %v1697 = vadd.f32 %v1668, %v1683
          %v1698 = vadd.f32 %v1671, %v1683
          %v1699 = vadd.f32 %v1674, %v1683
          %v1700 = vadd.f32 %v1677, %v1683
          %vm1701 = vcmask 7168
          %1702 = vst.msk [vmem:[%s368] sm:$0xff] %vm1701, %v1685
          %1703 = vst.msk [vmem:[%s368 + $0x8] sm:$0xff] %vm1701, %v1686
          %1704 = vst.msk [vmem:[%s368 + $0x10] sm:$0xff] %vm1701, %v1687
          %1705 = vst.msk [vmem:[%s368 + $0x18] sm:$0xff] %vm1701, %v1688
          %1706 = vst.msk [vmem:[%s368 + $0x20] sm:$0xff] %vm1701, %v1689
          %1707 = vst.msk [vmem:[%s368 + $0x28] sm:$0xff] %vm1701, %v1690
          %1708 = vst.msk [vmem:[%s368 + $0x30] sm:$0xff] %vm1701, %v1691
          %1709 = vst.msk [vmem:[%s368 + $0x38] sm:$0xff] %vm1701, %v1692
          %1710 = vst.msk [vmem:[%s368 + $0x40] sm:$0xff] %vm1701, %v1693
          %1711 = vst.msk [vmem:[%s368 + $0x48] sm:$0xff] %vm1701, %v1694
          %1712 = vst.msk [vmem:[%s368 + $0x50] sm:$0xff] %vm1701, %v1695
          %1713 = vst.msk [vmem:[%s368 + $0x58] sm:$0xff] %vm1701, %v1696
          %1714 = vst.msk [vmem:[%s368 + $0x60] sm:$0xff] %vm1701, %v1697
          %1715 = vst.msk [vmem:[%s368 + $0x68] sm:$0xff] %vm1701, %v1698
          %1716 = vst.msk [vmem:[%s368 + $0x70] sm:$0xff] %vm1701, %v1699
          %1717 = vst.msk [vmem:[%s368 + $0x78] sm:$0xff] %vm1701, %v1700
        $region72: #{net_full_forward.1} parent=59 // pred_fallthru
          _
        %s1718 = smul.u32 16, %s29
        %p1719 = scmp.lt.s32.totalorder %s1718, 31
        %s1720 = scalar_select %p1719, %s1718, 31
        %s1721 = smul.addr %s1720, 8
        %s1722 = scalar_lea.vmem %s10, %s1721
        // Predicated region
        $region73: #{net_full_forward.1} parent=59 // pred_check
          %p1723 = pneg %p264
        $region74: #{net_full_forward.1} parent=59 // pred_check_branch
          %1725 = sbr.rel (%p1723) target = $region76
        $region75: #{net_full_forward.1} parent=59 // pred_region
          %s1726 = smul.u32 16, %s29
        $region76: #{net_full_forward.1} parent=59 // pred_fallthru
          _
      $region60: #{net_full_forward.1} parent=5 // pred_fallthru
        _
      %p1727 = scmp.le.s32.totalorder 2, %s19
      // Predicated region
      $region77: #{net_full_forward.1} parent=5 // pred_check
        %p1728 = pneg %p1727
      $region78: #{net_full_forward.1} parent=5 // pred_check_branch
        %1730 = sbr.rel (%p1728) target = $region80
      $region79: #{net_full_forward.1} parent=5 // pred_region
        %s1731 = ssub.s32 %s19, 2
        // Predicated region
        $region81: #{net_full_forward.1} parent=79 // pred_check
          %p1732 = pneg %p270
        $region82: #{net_full_forward.1} parent=79 // pred_check_branch
          %1734 = sbr.rel (%p1732) target = $region84
        $region83: #{net_full_forward.1} parent=79 // pred_region
          %s1735 = smul.u32 16, %s31
          %p1736 = scmp.lt.s32.totalorder %s1735, 31
          %s1737 = scalar_select %p1736, %s1735, 31
          %s1738 = smul.addr %s1737, 8
          %s1739 = scalar_lea.vmem %s10, %s1738
        $region84: #{net_full_forward.1} parent=79 // pred_fallthru
          _
      $region80: #{net_full_forward.1} parent=5 // pred_fallthru
        _
    $region6: #{net_full_forward.1} parent=1 // loop_footer
      %s23 = sadd.s32 1, %s19
    $region7: #{net_full_forward.1} parent=1 // loop_footer_branch
      %18 = sbr.rel target = $region3
    $region8: #{net_full_forward.1} parent=1 // loop_exit
      _
    %1740 = vsyncpa [#allocation5], 1
    %s1741 = scalar_lea.sflag [#allocation5], 1
    %1742 = vsyncpa %s1741, 1

</llo_original>
